<compile_context>
chip_gen: v7x
topology: tpu7x:2x2x1
jax: 0.10.0
libtpu: 0.0.40
codegen_flags: <defaults>
</compile_context>

<pallas_src>
import jax
import jax.numpy as jnp
import numpy as np
from jax import lax
from jax.experimental import pallas as pl
from jax.experimental.pallas import tpu as pltpu

_LANE = 128
_SUBLANE = 8


def _ceil_to(x, m):
    return ((x + m - 1) // m) * m


def _pad2(x, rows, cols):
    """Zero-pad a 2-D array up to (rows, cols)."""
    return jnp.pad(x, ((0, rows - x.shape[0]), (0, cols - x.shape[1])))


def _gelu(x):
    # tanh-approximate GELU (EUP-friendly), computed in f32.
    c = jnp.float32(0.7978845608028654)  # sqrt(2/pi)
    return 0.5 * x * (1.0 + jnp.tanh(c * (x + 0.044715 * x * x * x)))


def _segment_mean_matrix(rows_out, n_cols, seg):
    """(rows_out, n_cols) f32 matrix; row r averages columns [r*seg,(r+1)*seg).

    Built in-kernel from iotas (no HBM traffic).  Rows whose segment lies
    past n_cols are all-zero (sublane padding rows).
    """
    r = lax.broadcasted_iota(jnp.int32, (rows_out, n_cols), 0)
    c = lax.broadcasted_iota(jnp.int32, (rows_out, n_cols), 1)
    lo = r * seg
    inside = (c >= lo) & (c < lo + seg)
    return jnp.where(inside, jnp.float32(1.0 / seg), jnp.float32(0.0))


# ----------------------------------------------------------------------------
# Fused image+text forward kernel
# ----------------------------------------------------------------------------
def _fused_forward(patches, img_w1, img_b1, img_w2, img_b2,
                   ids, emb_table, tw_enc, tb_enc, tw_pool, tb_pool, proj,
                   *, n_patches, seq_len, b_pad):
    BP = patches.shape[0]          # B * n_patches
    BL = ids.shape[0]              # B * seq_len
    V = emb_table.shape[0]         # padded vocab (multiple of 128)
    F = proj.shape[1]              # padded feature dim (multiple of 128)

    def kernel(patches_ref, iw1_ref, ib1_ref, iw2_ref, ib2_ref,
               ids_ref, tab_ref, twe_ref, tbe_ref, twp_ref, tbp_ref, prj_ref,
               out_ref):
        branch = pl.program_id(0)

        @pl.when(branch == 0)
        def _image_branch():
            # patch embedding -> GELU -> per-image mean -> linear head
            h = jnp.dot(patches_ref[...], iw1_ref[...],
                        preferred_element_type=jnp.float32) + ib1_ref[...]
            h = _gelu(h)
            pool = _segment_mean_matrix(b_pad, BP, n_patches)
            pooled = jnp.dot(pool, h, preferred_element_type=jnp.float32)
            out_ref[...] = (jnp.dot(pooled.astype(jnp.bfloat16), iw2_ref[...],
                                    preferred_element_type=jnp.float32)
                            + ib2_ref[...])

        @pl.when(branch == 1)
        def _text_branch():
            # in-kernel embedding gather (one-hot matmul against the table)
            ids_v = ids_ref[...]                                  # (BL, 1) i32
            lanes = lax.broadcasted_iota(jnp.int32, (BL, V), 1)
            onehot = jnp.where(lanes == ids_v, 1.0, 0.0).astype(jnp.bfloat16)
            emb = jnp.dot(onehot, tab_ref[...],
                          preferred_element_type=jnp.float32)     # (BL, HT)
            # per-token linear + GELU -> per-sequence mean
            h = _gelu(jnp.dot(emb.astype(jnp.bfloat16), twe_ref[...],
                              preferred_element_type=jnp.float32)
                      + tbe_ref[...])
            pool = _segment_mean_matrix(b_pad, BL, seq_len)
            pooled = jnp.dot(pool, h, preferred_element_type=jnp.float32)
            # tanh pooler (BERT pooler_output analogue) -> text projection
            pooler = jnp.tanh(jnp.dot(pooled.astype(jnp.bfloat16), twp_ref[...],
                                      preferred_element_type=jnp.float32)
                              + tbp_ref[...])
            out_ref[...] = jnp.dot(pooler.astype(jnp.bfloat16), prj_ref[...],
                                   preferred_element_type=jnp.float32)

    operands = (patches, img_w1, img_b1, img_w2, img_b2,
                ids, emb_table, tw_enc, tb_enc, tw_pool, tb_pool, proj)

    # All operands are small and 2-D: whole-array VMEM blocks, DMA'd once
    # (constant index map across the 2 grid steps).
    in_specs = [pl.BlockSpec(a.shape, lambda i: (0, 0)) for a in operands]

    grid_spec = pltpu.PrefetchScalarGridSpec(
        num_scalar_prefetch=0,
        grid=(2,),                      # branch axis: 0 = image, 1 = text
        in_specs=in_specs,
        out_specs=pl.BlockSpec((b_pad, F), lambda i: (i, 0)),
    )

    return pl.pallas_call(
        kernel,
        out_shape=jax.ShapeDtypeStruct((2 * b_pad, F), jnp.float32),
        grid_spec=grid_spec,
        compiler_params=pltpu.CompilerParams(
            dimension_semantics=("parallel",)),   # v7x: one branch per TC
    )(*operands)


# ----------------------------------------------------------------------------
# PMCCLIP (synthetic encoders + projection; forward returns raw features,
# logit_scale is stored but unused, exactly as in the reference module)
# ----------------------------------------------------------------------------
class PMCCLIP:
    LOGIT_SCALE = 4.4292  # stored, unused in forward (matches reference)

    def __init__(self, *, patch=8, img_channels=4, img_hidden=32,
                 feat_dim=32, vocab=100, seq_len=77, text_hidden=64,
                 key=None):
        if key is None:
            key = jax.random.PRNGKey(0)
        self.patch = patch
        self.seq_len = seq_len
        self.feat_dim = feat_dim
        ks = jax.random.split(key, 6)
        d_patch = img_channels * patch * patch

        # ---- canonical f32 params (used by the pure-JAX reference) ----------
        self.img_w1 = jax.random.normal(ks[0], (d_patch, img_hidden),
                                        jnp.float32) * 0.02
        self.img_b1 = jnp.zeros((1, img_hidden), jnp.float32)
        self.img_w2 = jax.random.normal(ks[1], (img_hidden, feat_dim),
                                        jnp.float32) * 0.02
        self.img_b2 = jnp.zeros((1, feat_dim), jnp.float32)

        self.emb_table = jax.random.normal(ks[2], (vocab, text_hidden),
                                           jnp.float32) * 0.02
        self.txt_w_enc = jax.random.normal(ks[3], (text_hidden, text_hidden),
                                           jnp.float32) * 0.02
        self.txt_b_enc = jnp.zeros((1, text_hidden), jnp.float32)
        self.txt_w_pool = jax.random.normal(ks[4], (text_hidden, text_hidden),
                                            jnp.float32) * 0.02
        self.txt_b_pool = jnp.zeros((1, text_hidden), jnp.float32)
        self.text_projection_layer = jax.random.normal(
            ks[5], (text_hidden, feat_dim), jnp.float32) * 0.02

        # ---- lane-dense (padded to 128) bf16 copies for the kernel ----------
        dp = _ceil_to(d_patch, _LANE)
        hi = _ceil_to(img_hidden, _LANE)
        ht = _ceil_to(text_hidden, _LANE)
        f = _ceil_to(feat_dim, _LANE)
        v = _ceil_to(vocab, _LANE)
        self._dp = dp
        self._img_w1_p = _pad2(self.img_w1, dp, hi).astype(jnp.bfloat16)
        self._img_b1_p = _pad2(self.img_b1, 1, hi)                 # f32
        self._img_w2_p = _pad2(self.img_w2, hi, f).astype(jnp.bfloat16)
        self._img_b2_p = _pad2(self.img_b2, 1, f)                  # f32
        self._emb_p = _pad2(self.emb_table, v, ht).astype(jnp.bfloat16)
        self._tw_enc_p = _pad2(self.txt_w_enc, ht, ht).astype(jnp.bfloat16)
        self._tb_enc_p = _pad2(self.txt_b_enc, 1, ht)              # f32
        self._tw_pool_p = _pad2(self.txt_w_pool, ht, ht).astype(jnp.bfloat16)
        self._tb_pool_p = _pad2(self.txt_b_pool, 1, ht)            # f32
        self._proj_p = _pad2(self.text_projection_layer,
                             ht, f).astype(jnp.bfloat16)

    # ---- glue: NCHW image -> (B*P, C*p*p) patch matrix ----------------------
    def _patchify(self, image_nchw):
        B, C, H, W = image_nchw.shape
        p = self.patch
        x = jnp.transpose(image_nchw, (0, 2, 3, 1))              # NHWC
        x = x.reshape(B, H // p, p, W // p, p, C)
        x = jnp.transpose(x, (0, 1, 3, 2, 4, 5))                 # B,hp,wp,p,p,C
        return x.reshape(B * (H // p) * (W // p), p * p * C)

    def __call__(self, image, input_ids):
        # TODO(synk): HuggingFace AutoTokenizer has no Pallas equivalent;
        # `input_ids` are supplied pre-tokenized (shape (B, 77), int32).
        B = image.shape[0]
        p = self.patch
        n_patches = (image.shape[2] // p) * (image.shape[3] // p)
        L = input_ids.shape[1]
        b_pad = max(_SUBLANE, _ceil_to(B, _SUBLANE))

        patches = self._patchify(image).astype(jnp.float32)       # (B*P, D)
        patches = _pad2(patches, patches.shape[0],
                        self._dp).astype(jnp.bfloat16)
        ids = input_ids.reshape(B * L, 1).astype(jnp.int32)       # (B*L, 1)

        out = _fused_forward(
            patches, self._img_w1_p, self._img_b1_p,
            self._img_w2_p, self._img_b2_p,
            ids, self._emb_p, self._tw_enc_p, self._tb_enc_p,
            self._tw_pool_p, self._tb_pool_p, self._proj_p,
            n_patches=n_patches, seq_len=L, b_pad=b_pad)

        image_feature = out[:B, :self.feat_dim]
        text_feature = out[b_pad:b_pad + B, :self.feat_dim]
        return image_feature, text_feature

    # pure-JAX f32 reference for correctness checking
    def reference(self, image, input_ids):
        B = image.shape[0]
        p = self.patch
        n_patches = (image.shape[2] // p) * (image.shape[3] // p)

        patches = self._patchify(image).astype(jnp.float32)
        h = _gelu(patches @ self.img_w1 + self.img_b1)
        h = h.reshape(B, n_patches, -1).mean(axis=1)
        img_feat = h @ self.img_w2 + self.img_b2

        emb = jnp.take(self.emb_table, input_ids, axis=0)
        t = _gelu(emb @ self.txt_w_enc + self.txt_b_enc).mean(axis=1)
        pooled = jnp.tanh(t @ self.txt_w_pool + self.txt_b_pool)
        txt_feat = pooled @ self.text_projection_layer
        return img_feat, txt_feat


# ----------------------------------------------------------------------------
if __name__ == "__main__":
    key = jax.random.PRNGKey(0)
    k_img, k_ids, k_params = jax.random.split(key, 3)

    B, C, H, W = 2, 4, 16, 16
    image = jax.random.normal(k_img, (B, C, H, W), jnp.float32)   # NCHW
    input_ids = jax.random.randint(k_ids, (B, 77), 0, 100, jnp.int32)

    model = PMCCLIP(key=k_params)

    image_feature, text_feature = model(image, input_ids)
    jax.block_until_ready((image_feature, text_feature))

    ref_img, ref_txt = model.reference(image, input_ids)
    assert image_feature.shape == (B, 32) and text_feature.shape == (B, 32)
    # bf16 matmul operands (f32 accumulation) => relaxed tolerances vs f32 ref
    np.testing.assert_allclose(np.asarray(image_feature), np.asarray(ref_img),
                               rtol=2e-2, atol=2e-3)
    np.testing.assert_allclose(np.asarray(text_feature), np.asarray(ref_txt),
                               rtol=2e-2, atol=2e-3)

    print("KERNEL_OK")
</pallas_src>

<mosaic_0001>
module attributes {stable_mosaic.version = 11 : i64} {
  func.func @kernel(%arg0: i32, %arg1: memref<8x256xbf16, #tpu.memory_space<vmem>>, %arg2: memref<256x128xbf16, #tpu.memory_space<vmem>>, %arg3: memref<1x128xf32, #tpu.memory_space<vmem>>, %arg4: memref<128x128xbf16, #tpu.memory_space<vmem>>, %arg5: memref<1x128xf32, #tpu.memory_space<vmem>>, %arg6: memref<154x1xi32, #tpu.memory_space<vmem>>, %arg7: memref<128x128xbf16, #tpu.memory_space<vmem>>, %arg8: memref<128x128xbf16, #tpu.memory_space<vmem>>, %arg9: memref<1x128xf32, #tpu.memory_space<vmem>>, %arg10: memref<128x128xbf16, #tpu.memory_space<vmem>>, %arg11: memref<1x128xf32, #tpu.memory_space<vmem>>, %arg12: memref<128x128xbf16, #tpu.memory_space<vmem>>, %arg13: memref<8x128xf32, #tpu.memory_space<vmem>>) attributes {dimension_semantics = [#tpu.dimension_semantics<parallel>], iteration_bounds = array<i64: 2>, scalar_prefetch = 0 : i64, scratch_operands = 0 : i64, tpu.core_type = #tpu.core_type<tc>, window_params = [{pipeline_mode = #tpu.pipeline_mode<synchronous>, transform_indices = @transform_0, window_bounds = array<i64: 8, 256>}, {pipeline_mode = #tpu.pipeline_mode<synchronous>, transform_indices = @transform_1, window_bounds = array<i64: 256, 128>}, {pipeline_mode = #tpu.pipeline_mode<synchronous>, transform_indices = @transform_2, window_bounds = array<i64: 1, 128>}, {pipeline_mode = #tpu.pipeline_mode<synchronous>, transform_indices = @transform_3, window_bounds = array<i64: 128, 128>}, {pipeline_mode = #tpu.pipeline_mode<synchronous>, transform_indices = @transform_4, window_bounds = array<i64: 1, 128>}, {pipeline_mode = #tpu.pipeline_mode<synchronous>, transform_indices = @transform_5, window_bounds = array<i64: 154, 1>}, {pipeline_mode = #tpu.pipeline_mode<synchronous>, transform_indices = @transform_6, window_bounds = array<i64: 128, 128>}, {pipeline_mode = #tpu.pipeline_mode<synchronous>, transform_indices = @transform_7, window_bounds = array<i64: 128, 128>}, {pipeline_mode = #tpu.pipeline_mode<synchronous>, transform_indices = @transform_8, window_bounds = array<i64: 1, 128>}, {pipeline_mode = #tpu.pipeline_mode<synchronous>, transform_indices = @transform_9, window_bounds = array<i64: 128, 128>}, {pipeline_mode = #tpu.pipeline_mode<synchronous>, transform_indices = @transform_10, window_bounds = array<i64: 1, 128>}, {pipeline_mode = #tpu.pipeline_mode<synchronous>, transform_indices = @transform_11, window_bounds = array<i64: 128, 128>}, {transform_indices = @transform_12, window_bounds = array<i64: 8, 128>}]} {
    %c0_i32 = arith.constant 0 : i32
    %0 = arith.cmpi eq, %arg0, %c0_i32 : i32
    %1 = arith.extui %0 : i1 to i32
    %c0_i32_0 = arith.constant 0 : i32
    %2 = arith.cmpi ne, %1, %c0_i32_0 : i32
    scf.if %2 {
      %c0 = arith.constant 0 : index
      %c0_2 = arith.constant 0 : index
      %6 = vector.load %arg1[%c0, %c0_2] : memref<8x256xbf16, #tpu.memory_space<vmem>>, vector<8x256xbf16>
      %c0_3 = arith.constant 0 : index
      %c0_4 = arith.constant 0 : index
      %7 = vector.load %arg2[%c0_3, %c0_4] : memref<256x128xbf16, #tpu.memory_space<vmem>>, vector<256x128xbf16>
      %cst = arith.constant dense<0.000000e+00> : vector<8x128xf32>
      %8 = tpu.matmul %6, %7, %cst {dimension_numbers = #tpu.dot_dimension_numbers<[1], [0], [0], [1], [0, 0, 1, 1], [], []>} : vector<8x256xbf16>, vector<256x128xbf16>, vector<8x128xf32> -> vector<8x128xf32>
      %c0_5 = arith.constant 0 : index
      %c0_6 = arith.constant 0 : index
      %9 = vector.load %arg3[%c0_5, %c0_6] : memref<1x128xf32, #tpu.memory_space<vmem>>, vector<1x128xf32>
      %10 = vector.broadcast %9 : vector<1x128xf32> to vector<8x128xf32>
      %11 = arith.addf %8, %10 : vector<8x128xf32>
      %cst_7 = arith.constant 5.000000e-01 : f32
      %12 = vector.broadcast %cst_7 : f32 to vector<8x128xf32>
      %13 = arith.mulf %12, %11 : vector<8x128xf32>
      %cst_8 = arith.constant 4.471500e-02 : f32
      %14 = vector.broadcast %cst_8 : f32 to vector<8x128xf32>
      %15 = arith.mulf %14, %11 : vector<8x128xf32>
      %16 = arith.mulf %15, %11 : vector<8x128xf32>
      %17 = arith.mulf %16, %11 : vector<8x128xf32>
      %18 = arith.addf %11, %17 : vector<8x128xf32>
      %cst_9 = arith.constant 0.797884583 : f32
      %19 = vector.broadcast %cst_9 : f32 to vector<8x128xf32>
      %20 = arith.mulf %19, %18 : vector<8x128xf32>
      %21 = math.tanh %20 : vector<8x128xf32>
      %cst_10 = arith.constant 1.000000e+00 : f32
      %22 = vector.broadcast %cst_10 : f32 to vector<8x128xf32>
      %23 = arith.addf %22, %21 : vector<8x128xf32>
      %24 = arith.mulf %13, %23 : vector<8x128xf32>
      %25 = tpu.iota {dimensions = array<i32: 0>} : vector<8x8xi32>
      %26 = tpu.iota {dimensions = array<i32: 1>} : vector<8x8xi32>
      %c4_i32 = arith.constant 4 : i32
      %27 = vector.broadcast %c4_i32 : i32 to vector<8x8xi32>
      %28 = arith.muli %25, %27 : vector<8x8xi32>
      %29 = arith.cmpi sge, %26, %28 : vector<8x8xi32>
      %c4_i32_11 = arith.constant 4 : i32
      %30 = vector.broadcast %c4_i32_11 : i32 to vector<8x8xi32>
      %31 = arith.addi %28, %30 : vector<8x8xi32>
      %32 = arith.cmpi slt, %26, %31 : vector<8x8xi32>
      %33 = arith.andi %29, %32 : vector<8x8xi1>
      %cst_12 = arith.constant 2.500000e-01 : f32
      %cst_13 = arith.constant 0.000000e+00 : f32
      %34 = vector.broadcast %cst_12 : f32 to vector<8x8xf32>
      %35 = vector.broadcast %cst_13 : f32 to vector<8x8xf32>
      %36 = arith.select %33, %34, %35 : vector<8x8xi1>, vector<8x8xf32>
      %cst_14 = arith.constant dense<0.000000e+00> : vector<8x128xf32>
      %37 = tpu.matmul %36, %24, %cst_14 {dimension_numbers = #tpu.dot_dimension_numbers<[1], [0], [0], [1], [0, 0, 1, 1], [], []>} : vector<8x8xf32>, vector<8x128xf32>, vector<8x128xf32> -> vector<8x128xf32>
      %38 = arith.truncf %37 : vector<8x128xf32> to vector<8x128xbf16>
      %c0_15 = arith.constant 0 : index
      %c0_16 = arith.constant 0 : index
      %39 = vector.load %arg4[%c0_15, %c0_16] : memref<128x128xbf16, #tpu.memory_space<vmem>>, vector<128x128xbf16>
      %cst_17 = arith.constant dense<0.000000e+00> : vector<8x128xf32>
      %40 = tpu.matmul %38, %39, %cst_17 {dimension_numbers = #tpu.dot_dimension_numbers<[1], [0], [0], [1], [0, 0, 1, 1], [], []>} : vector<8x128xbf16>, vector<128x128xbf16>, vector<8x128xf32> -> vector<8x128xf32>
      %c0_18 = arith.constant 0 : index
      %c0_19 = arith.constant 0 : index
      %41 = vector.load %arg5[%c0_18, %c0_19] : memref<1x128xf32, #tpu.memory_space<vmem>>, vector<1x128xf32>
      %42 = vector.broadcast %41 : vector<1x128xf32> to vector<8x128xf32>
      %43 = arith.addf %40, %42 : vector<8x128xf32>
      %c0_20 = arith.constant 0 : index
      %c0_21 = arith.constant 0 : index
      %44 = vector.load %arg13[%c0_20, %c0_21] : memref<8x128xf32, #tpu.memory_space<vmem>>, vector<8x128xf32>
      tpu.vector_store %arg13[%c0_20, %c0_21], %43 {strides = array<i32>} : memref<8x128xf32, #tpu.memory_space<vmem>>, vector<8x128xf32>,
    } else {
    }
    %c1_i32 = arith.constant 1 : i32
    %3 = arith.cmpi eq, %arg0, %c1_i32 : i32
    %4 = arith.extui %3 : i1 to i32
    %c0_i32_1 = arith.constant 0 : i32
    %5 = arith.cmpi ne, %4, %c0_i32_1 : i32
    scf.if %5 {
      %c0 = arith.constant 0 : index
      %c0_2 = arith.constant 0 : index
      %6 = vector.load %arg6[%c0, %c0_2] : memref<154x1xi32, #tpu.memory_space<vmem>>, vector<154x1xi32>
      %7 = tpu.iota {dimensions = array<i32: 1>} : vector<154x128xi32>
      %8 = vector.broadcast %6 : vector<154x1xi32> to vector<154x128xi32>
      %9 = arith.cmpi eq, %7, %8 : vector<154x128xi32>
      %cst = arith.constant 1.000000e+00 : f32
      %cst_3 = arith.constant 0.000000e+00 : f32
      %10 = vector.broadcast %cst : f32 to vector<154x128xf32>
      %11 = vector.broadcast %cst_3 : f32 to vector<154x128xf32>
      %12 = arith.select %9, %10, %11 : vector<154x128xi1>, vector<154x128xf32>
      %13 = arith.truncf %12 : vector<154x128xf32> to vector<154x128xbf16>
      %c0_4 = arith.constant 0 : index
      %c0_5 = arith.constant 0 : index
      %14 = vector.load %arg7[%c0_4, %c0_5] : memref<128x128xbf16, #tpu.memory_space<vmem>>, vector<128x128xbf16>
      %cst_6 = arith.constant dense<0.000000e+00> : vector<154x128xf32>
      %15 = tpu.matmul %13, %14, %cst_6 {dimension_numbers = #tpu.dot_dimension_numbers<[1], [0], [0], [1], [0, 0, 1, 1], [], []>} : vector<154x128xbf16>, vector<128x128xbf16>, vector<154x128xf32> -> vector<154x128xf32>
      %16 = arith.truncf %15 : vector<154x128xf32> to vector<154x128xbf16>
      %c0_7 = arith.constant 0 : index
      %c0_8 = arith.constant 0 : index
      %17 = vector.load %arg8[%c0_7, %c0_8] : memref<128x128xbf16, #tpu.memory_space<vmem>>, vector<128x128xbf16>
      %cst_9 = arith.constant dense<0.000000e+00> : vector<154x128xf32>
      %18 = tpu.matmul %16, %17, %cst_9 {dimension_numbers = #tpu.dot_dimension_numbers<[1], [0], [0], [1], [0, 0, 1, 1], [], []>} : vector<154x128xbf16>, vector<128x128xbf16>, vector<154x128xf32> -> vector<154x128xf32>
      %c0_10 = arith.constant 0 : index
      %c0_11 = arith.constant 0 : index
      %19 = vector.load %arg9[%c0_10, %c0_11] : memref<1x128xf32, #tpu.memory_space<vmem>>, vector<1x128xf32>
      %20 = vector.broadcast %19 : vector<1x128xf32> to vector<154x128xf32>
      %21 = arith.addf %18, %20 : vector<154x128xf32>
      %cst_12 = arith.constant 5.000000e-01 : f32
      %22 = vector.broadcast %cst_12 : f32 to vector<154x128xf32>
      %23 = arith.mulf %22, %21 : vector<154x128xf32>
      %cst_13 = arith.constant 4.471500e-02 : f32
      %24 = vector.broadcast %cst_13 : f32 to vector<154x128xf32>
      %25 = arith.mulf %24, %21 : vector<154x128xf32>
      %26 = arith.mulf %25, %21 : vector<154x128xf32>
      %27 = arith.mulf %26, %21 : vector<154x128xf32>
      %28 = arith.addf %21, %27 : vector<154x128xf32>
      %cst_14 = arith.constant 0.797884583 : f32
      %29 = vector.broadcast %cst_14 : f32 to vector<154x128xf32>
      %30 = arith.mulf %29, %28 : vector<154x128xf32>
      %31 = math.tanh %30 : vector<154x128xf32>
      %cst_15 = arith.constant 1.000000e+00 : f32
      %32 = vector.broadcast %cst_15 : f32 to vector<154x128xf32>
      %33 = arith.addf %32, %31 : vector<154x128xf32>
      %34 = arith.mulf %23, %33 : vector<154x128xf32>
      %35 = tpu.iota {dimensions = array<i32: 0>} : vector<8x154xi32>
      %36 = tpu.iota {dimensions = array<i32: 1>} : vector<8x154xi32>
      %c77_i32 = arith.constant 77 : i32
      %37 = vector.broadcast %c77_i32 : i32 to vector<8x154xi32>
      %38 = arith.muli %35, %37 : vector<8x154xi32>
      %39 = arith.cmpi sge, %36, %38 : vector<8x154xi32>
      %c77_i32_16 = arith.constant 77 : i32
      %40 = vector.broadcast %c77_i32_16 : i32 to vector<8x154xi32>
      %41 = arith.addi %38, %40 : vector<8x154xi32>
      %42 = arith.cmpi slt, %36, %41 : vector<8x154xi32>
      %43 = arith.andi %39, %42 : vector<8x154xi1>
      %cst_17 = arith.constant 0.012987013 : f32
      %cst_18 = arith.constant 0.000000e+00 : f32
      %44 = vector.broadcast %cst_17 : f32 to vector<8x154xf32>
      %45 = vector.broadcast %cst_18 : f32 to vector<8x154xf32>
      %46 = arith.select %43, %44, %45 : vector<8x154xi1>, vector<8x154xf32>
      %cst_19 = arith.constant dense<0.000000e+00> : vector<8x128xf32>
      %47 = tpu.matmul %46, %34, %cst_19 {dimension_numbers = #tpu.dot_dimension_numbers<[1], [0], [0], [1], [0, 0, 1, 1], [], []>} : vector<8x154xf32>, vector<154x128xf32>, vector<8x128xf32> -> vector<8x128xf32>
      %48 = arith.truncf %47 : vector<8x128xf32> to vector<8x128xbf16>
      %c0_20 = arith.constant 0 : index
      %c0_21 = arith.constant 0 : index
      %49 = vector.load %arg10[%c0_20, %c0_21] : memref<128x128xbf16, #tpu.memory_space<vmem>>, vector<128x128xbf16>
      %cst_22 = arith.constant dense<0.000000e+00> : vector<8x128xf32>
      %50 = tpu.matmul %48, %49, %cst_22 {dimension_numbers = #tpu.dot_dimension_numbers<[1], [0], [0], [1], [0, 0, 1, 1], [], []>} : vector<8x128xbf16>, vector<128x128xbf16>, vector<8x128xf32> -> vector<8x128xf32>
      %c0_23 = arith.constant 0 : index
      %c0_24 = arith.constant 0 : index
      %51 = vector.load %arg11[%c0_23, %c0_24] : memref<1x128xf32, #tpu.memory_space<vmem>>, vector<1x128xf32>
      %52 = vector.broadcast %51 : vector<1x128xf32> to vector<8x128xf32>
      %53 = arith.addf %50, %52 : vector<8x128xf32>
      %54 = math.tanh %53 : vector<8x128xf32>
      %55 = arith.truncf %54 : vector<8x128xf32> to vector<8x128xbf16>
      %c0_25 = arith.constant 0 : index
      %c0_26 = arith.constant 0 : index
      %56 = vector.load %arg12[%c0_25, %c0_26] : memref<128x128xbf16, #tpu.memory_space<vmem>>, vector<128x128xbf16>
      %cst_27 = arith.constant dense<0.000000e+00> : vector<8x128xf32>
      %57 = tpu.matmul %55, %56, %cst_27 {dimension_numbers = #tpu.dot_dimension_numbers<[1], [0], [0], [1], [0, 0, 1, 1], [], []>} : vector<8x128xbf16>, vector<128x128xbf16>, vector<8x128xf32> -> vector<8x128xf32>
      %c0_28 = arith.constant 0 : index
      %c0_29 = arith.constant 0 : index
      %58 = vector.load %arg13[%c0_28, %c0_29] : memref<8x128xf32, #tpu.memory_space<vmem>>, vector<8x128xf32>
      tpu.vector_store %arg13[%c0_28, %c0_29], %57 {strides = array<i32>} : memref<8x128xf32, #tpu.memory_space<vmem>>, vector<8x128xf32>,
    } else {
    }
    return
  }
  func.func @transform_0(%arg0: i32) -> (i32, i32) {
    %c0_i32 = arith.constant 0 : i32
    %c0_i32_0 = arith.constant 0 : i32
    %c0_i32_1 = arith.constant 0 : i32
    return %c0_i32, %c0_i32_0 : i32, i32
  }
  func.func @transform_1(%arg0: i32) -> (i32, i32) {
    %c0_i32 = arith.constant 0 : i32
    %c0_i32_0 = arith.constant 0 : i32
    %c0_i32_1 = arith.constant 0 : i32
    return %c0_i32, %c0_i32_0 : i32, i32
  }
  func.func @transform_2(%arg0: i32) -> (i32, i32) {
    %c0_i32 = arith.constant 0 : i32
    %c0_i32_0 = arith.constant 0 : i32
    %c0_i32_1 = arith.constant 0 : i32
    return %c0_i32, %c0_i32_0 : i32, i32
  }
  func.func @transform_3(%arg0: i32) -> (i32, i32) {
    %c0_i32 = arith.constant 0 : i32
    %c0_i32_0 = arith.constant 0 : i32
    %c0_i32_1 = arith.constant 0 : i32
    return %c0_i32, %c0_i32_0 : i32, i32
  }
  func.func @transform_4(%arg0: i32) -> (i32, i32) {
    %c0_i32 = arith.constant 0 : i32
    %c0_i32_0 = arith.constant 0 : i32
    %c0_i32_1 = arith.constant 0 : i32
    return %c0_i32, %c0_i32_0 : i32, i32
  }
  func.func @transform_5(%arg0: i32) -> (i32, i32) {
    %c0_i32 = arith.constant 0 : i32
    %c0_i32_0 = arith.constant 0 : i32
    %c0_i32_1 = arith.constant 0 : i32
    return %c0_i32, %c0_i32_0 : i32, i32
  }
  func.func @transform_6(%arg0: i32) -> (i32, i32) {
    %c0_i32 = arith.constant 0 : i32
    %c0_i32_0 = arith.constant 0 : i32
    %c0_i32_1 = arith.constant 0 : i32
    return %c0_i32, %c0_i32_0 : i32, i32
  }
  func.func @transform_7(%arg0: i32) -> (i32, i32) {
    %c0_i32 = arith.constant 0 : i32
    %c0_i32_0 = arith.constant 0 : i32
    %c0_i32_1 = arith.constant 0 : i32
    return %c0_i32, %c0_i32_0 : i32, i32
  }
  func.func @transform_8(%arg0: i32) -> (i32, i32) {
    %c0_i32 = arith.constant 0 : i32
    %c0_i32_0 = arith.constant 0 : i32
    %c0_i32_1 = arith.constant 0 : i32
    return %c0_i32, %c0_i32_0 : i32, i32
  }
  func.func @transform_9(%arg0: i32) -> (i32, i32) {
    %c0_i32 = arith.constant 0 : i32
    %c0_i32_0 = arith.constant 0 : i32
    %c0_i32_1 = arith.constant 0 : i32
    return %c0_i32, %c0_i32_0 : i32, i32
  }
  func.func @transform_10(%arg0: i32) -> (i32, i32) {
    %c0_i32 = arith.constant 0 : i32
    %c0_i32_0 = arith.constant 0 : i32
    %c0_i32_1 = arith.constant 0 : i32
    return %c0_i32, %c0_i32_0 : i32, i32
  }
  func.func @transform_11(%arg0: i32) -> (i32, i32) {
    %c0_i32 = arith.constant 0 : i32
    %c0_i32_0 = arith.constant 0 : i32
    %c0_i32_1 = arith.constant 0 : i32
    return %c0_i32, %c0_i32_0 : i32, i32
  }
  func.func @transform_12(%arg0: i32) -> (i32, i32) {
    %c0_i32 = arith.constant 0 : i32
    %c0_i32_0 = arith.constant 0 : i32
    return %arg0, %c0_i32 : i32, i32
  }
}

</mosaic_0001>

<llo_original>
// kernel: tpu_custom_call.1
$region0: #{tpu_custom_call.1}
  #allocation0 [shape = 'u32[]', space=smem, size = 0x4, offset = 0x4, fixed_abs, tag = 'smem constant byte address 0x4 - core index']
  #allocation1 [shape = 'u32[144,128]{1,0:T(1,128)}', space=vmem, size = 0x12000, scoped, tag = 'internal scratch']
  %s0 = inlined_call_operand.hbm [shape: bf16[8,256], index: 0, kind: input, shape index: {}]
  %s1 = inlined_call_operand.vmem [shape: bf16[256,128], index: 1, kind: input, shape index: {}]
  %s2 = inlined_call_operand.hbm [shape: f32[1,128], index: 2, kind: input, shape index: {}]
  %s3 = inlined_call_operand.hbm [shape: bf16[128,128], index: 3, kind: input, shape index: {}]
  %s4 = inlined_call_operand.hbm [shape: f32[1,128], index: 4, kind: input, shape index: {}]
  %s5 = inlined_call_operand.vmem [shape: s32[154,1], index: 5, kind: input, shape index: {}]
  %s6 = inlined_call_operand.hbm [shape: bf16[128,128], index: 6, kind: input, shape index: {}]
  %s7 = inlined_call_operand.hbm [shape: bf16[128,128], index: 7, kind: input, shape index: {}]
  %s8 = inlined_call_operand.hbm [shape: f32[1,128], index: 8, kind: input, shape index: {}]
  %s9 = inlined_call_operand.vmem [shape: bf16[128,128], index: 9, kind: input, shape index: {}]
  %s10 = inlined_call_operand.vmem [shape: f32[1,128], index: 10, kind: input, shape index: {}]
  %s11 = inlined_call_operand.hbm [shape: bf16[128,128], index: 11, kind: input, shape index: {}]
  %s12 = inlined_call_operand.hbm [shape: f32[16,128], index: 12, kind: output, shape index: {}]
  %s13 = sld [smem:[#allocation0]]
  $region121: #{tpu_custom_call.1} parent=0
    _
  %s15 = ssub.s32 1, %s13
  %s16 = scalar_select 0, %s15, %s13
  $region1: #{tpu_custom_call.1} parent=0
    #allocation2 [shape = 'u8[4096]{0}', space=vmem, size = 0x1000, scoped, tag = 'input window, operand 0, single buffered']
    #allocation3 [shape = 's32[2]{0}', space=sflag, size = 0x8, scoped, tag = 'scoped memory for tpu_custom_call.1']
    #allocation4 [shape = 's32[2]{0}', space=sflag, size = 0x8, scoped, tag = 'scoped memory for tpu_custom_call.1']
    #allocation5 [shape = 'u8[512]{0}', space=vmem, size = 0x400, scoped, tag = 'input window, operand 2, single buffered']
    #allocation6 [shape = 's32[1]{0}', space=sflag, size = 0x4, scoped, tag = 'scoped memory for tpu_custom_call.1']
    #allocation7 [shape = 'u8[32768]{0}', space=vmem, size = 0x8000, scoped, tag = 'input window, operand 3, single buffered']
    #allocation8 [shape = 'u8[512]{0}', space=vmem, size = 0x400, scoped, tag = 'input window, operand 4, single buffered']
    #allocation9 [shape = 's32[1]{0}', space=sflag, size = 0x4, scoped, tag = 'scoped memory for tpu_custom_call.1']
    #allocation10 [shape = 'u8[32768]{0}', space=vmem, size = 0x8000, scoped, tag = 'input window, operand 6, single buffered']
    #allocation11 [shape = 'u8[32768]{0}', space=vmem, size = 0x8000, scoped, tag = 'input window, operand 7, single buffered']
    #allocation12 [shape = 's32[1]{0}', space=sflag, size = 0x4, scoped, tag = 'scoped memory for tpu_custom_call.1']
    #allocation13 [shape = 'u8[512]{0}', space=vmem, size = 0x400, scoped, tag = 'input window, operand 8, single buffered']
    #allocation14 [shape = 'u8[32768]{0}', space=vmem, size = 0x8000, scoped, tag = 'input window, operand 11, single buffered']
    #allocation15 [shape = 's32[1]{0}', space=sflag, size = 0x4, scoped, tag = 'scoped memory for tpu_custom_call.1']
    #allocation16 [shape = 'u8[8192]{0}', space=vmem, size = 0x2000, scoped, tag = 'output window, operand 0']
    %17 = vsyncpa [#allocation3], 0
    %18 = vsyncpa [#allocation6], 0
    %19 = vsyncpa [#allocation9], 0
    %20 = vsyncpa [#allocation12], 0
    %21 = vsyncpa [#allocation15], 0
    %22 = vsyncpa [#allocation4], 0
    %s23 = scalar_lea.sflag [#allocation4], 1
    %24 = vsyncpa %s23, 0
    loop: start=0, step=1, limit=4
    $region2: #{tpu_custom_call.1} parent=1 // loop_pre_header
      _
    $region3: #{tpu_custom_call.1} parent=1 // loop_header
      %s26 = sphi 0, %s30
      %p27 = scmp.ge.s32.totalorder %s26, 4
      %s34 = sphi 0, %s34
      %s36 = sphi 0, %s34
      %s37 = sphi 0, %s36
      %s51 = sphi 0, %s37
      %s55 = sphi 0, %s55
      %s57 = sphi 0, %s55
      %s58 = sphi 0, %s57
      %s72 = sphi 0, %s58
      %s76 = sphi 0, %s76
      %s78 = sphi 0, %s76
      %s79 = sphi 0, %s78
      %s93 = sphi 0, %s79
      %s97 = sphi 0, %s97
      %s99 = sphi 0, %s97
      %s100 = sphi 0, %s99
      %s114 = sphi 0, %s100
      %s118 = sphi 0, %s118
      %s120 = sphi 0, %s118
      %s121 = sphi 0, %s120
      %s135 = sphi 0, %s121
      %s139 = sphi 0, %s139
      %s141 = sphi 0, %s139
      %s142 = sphi 0, %s141
      %s156 = sphi 0, %s142
      %s160 = sphi 0, %s160
      %s162 = sphi 0, %s160
      %s163 = sphi 0, %s162
      %s177 = sphi 0, %s163
      %s181 = sphi 0, %s181
      %s183 = sphi 0, %s181
      %s184 = sphi 0, %s183
      %s198 = sphi 0, %s184
      %s202 = sphi 0, %s202
      %s204 = sphi 0, %s202
      %s205 = sphi 0, %s204
      %s219 = sphi 0, %s205
      %s223 = sphi 0, %s223
      %s225 = sphi 0, %s223
      %s226 = sphi 0, %s225
      %s240 = sphi 0, %s226
      %s244 = sphi 0, %s244
      %s246 = sphi 0, %s244
      %s247 = sphi 0, %s246
      %s261 = sphi 0, %s247
      %s265 = sphi 0, %s265
      %s267 = sphi 0, %s265
      %s268 = sphi 0, %s267
      %s282 = sphi 0, %s268
      %s288 = sphi 0, %s290
      %s291 = sphi 0, %s288
      %s292 = sphi 0, %s291
      %s308 = sphi 0, %s292
    $region4: #{tpu_custom_call.1} parent=1 // loop_header_branch
      %29 = sbr.rel (%p27) target = $region8
    $region5: #{tpu_custom_call.1} parent=1 // loop_body
      %s31 = ssub.s32 %s26, 1
      %s32 = ssub.s32 %s26, 2
      %s33 = sadd.s32 %s26, 1
      %s35 = sadd.s32 %s34, 1
      %p38 = scmp.eq.s32.totalorder %s26, 1
      %p39 = scmp.ne.s32.totalorder %s34, %s36
      %p40 = scmp.eq.s32.totalorder %s26, 0
      %p41 = por %p39, %p40
      %p42 = scmp.ne.s32.totalorder %s34, %s36
      %p43 = scmp.eq.s32.totalorder %s31, 1
      %p44 = por %p42, %p43
      %p45 = scmp.ne.s32.totalorder %s36, %s37
      %p46 = scmp.eq.s32.totalorder %s31, 0
      %p47 = por %p45, %p46
      %p48 = scmp.ne.s32.totalorder %s36, %s37
      %p49 = scmp.eq.s32.totalorder %s32, 1
      %p50 = por %p48, %p49
      %p52 = scmp.ne.s32.totalorder %s37, %s51
      %p53 = scmp.eq.s32.totalorder %s32, 0
      %p54 = por %p52, %p53
      %s56 = sadd.s32 %s55, 1
      %p59 = scmp.eq.s32.totalorder %s26, 1
      %p60 = scmp.ne.s32.totalorder %s55, %s57
      %p61 = scmp.eq.s32.totalorder %s26, 0
      %p62 = por %p60, %p61
      %p63 = scmp.ne.s32.totalorder %s55, %s57
      %p64 = scmp.eq.s32.totalorder %s31, 1
      %p65 = por %p63, %p64
      %p66 = scmp.ne.s32.totalorder %s57, %s58
      %p67 = scmp.eq.s32.totalorder %s31, 0
      %p68 = por %p66, %p67
      %p69 = scmp.ne.s32.totalorder %s57, %s58
      %p70 = scmp.eq.s32.totalorder %s32, 1
      %p71 = por %p69, %p70
      %p73 = scmp.ne.s32.totalorder %s58, %s72
      %p74 = scmp.eq.s32.totalorder %s32, 0
      %p75 = por %p73, %p74
      %s77 = sadd.s32 %s76, 1
      %p80 = scmp.eq.s32.totalorder %s26, 1
      %p81 = scmp.ne.s32.totalorder %s76, %s78
      %p82 = scmp.eq.s32.totalorder %s26, 0
      %p83 = por %p81, %p82
      %p84 = scmp.ne.s32.totalorder %s76, %s78
      %p85 = scmp.eq.s32.totalorder %s31, 1
      %p86 = por %p84, %p85
      %p87 = scmp.ne.s32.totalorder %s78, %s79
      %p88 = scmp.eq.s32.totalorder %s31, 0
      %p89 = por %p87, %p88
      %p90 = scmp.ne.s32.totalorder %s78, %s79
      %p91 = scmp.eq.s32.totalorder %s32, 1
      %p92 = por %p90, %p91
      %p94 = scmp.ne.s32.totalorder %s79, %s93
      %p95 = scmp.eq.s32.totalorder %s32, 0
      %p96 = por %p94, %p95
      %s98 = sadd.s32 %s97, 1
      %p101 = scmp.eq.s32.totalorder %s26, 1
      %p102 = scmp.ne.s32.totalorder %s97, %s99
      %p103 = scmp.eq.s32.totalorder %s26, 0
      %p104 = por %p102, %p103
      %p105 = scmp.ne.s32.totalorder %s97, %s99
      %p106 = scmp.eq.s32.totalorder %s31, 1
      %p107 = por %p105, %p106
      %p108 = scmp.ne.s32.totalorder %s99, %s100
      %p109 = scmp.eq.s32.totalorder %s31, 0
      %p110 = por %p108, %p109
      %p111 = scmp.ne.s32.totalorder %s99, %s100
      %p112 = scmp.eq.s32.totalorder %s32, 1
      %p113 = por %p111, %p112
      %p115 = scmp.ne.s32.totalorder %s100, %s114
      %p116 = scmp.eq.s32.totalorder %s32, 0
      %p117 = por %p115, %p116
      %s119 = sadd.s32 %s118, 1
      %p122 = scmp.eq.s32.totalorder %s26, 1
      %p123 = scmp.ne.s32.totalorder %s118, %s120
      %p124 = scmp.eq.s32.totalorder %s26, 0
      %p125 = por %p123, %p124
      %p126 = scmp.ne.s32.totalorder %s118, %s120
      %p127 = scmp.eq.s32.totalorder %s31, 1
      %p128 = por %p126, %p127
      %p129 = scmp.ne.s32.totalorder %s120, %s121
      %p130 = scmp.eq.s32.totalorder %s31, 0
      %p131 = por %p129, %p130
      %p132 = scmp.ne.s32.totalorder %s120, %s121
      %p133 = scmp.eq.s32.totalorder %s32, 1
      %p134 = por %p132, %p133
      %p136 = scmp.ne.s32.totalorder %s121, %s135
      %p137 = scmp.eq.s32.totalorder %s32, 0
      %p138 = por %p136, %p137
      %s140 = sadd.s32 %s139, 1
      %p143 = scmp.eq.s32.totalorder %s26, 1
      %p144 = scmp.ne.s32.totalorder %s139, %s141
      %p145 = scmp.eq.s32.totalorder %s26, 0
      %p146 = por %p144, %p145
      %p147 = scmp.ne.s32.totalorder %s139, %s141
      %p148 = scmp.eq.s32.totalorder %s31, 1
      %p149 = por %p147, %p148
      %p150 = scmp.ne.s32.totalorder %s141, %s142
      %p151 = scmp.eq.s32.totalorder %s31, 0
      %p152 = por %p150, %p151
      %p153 = scmp.ne.s32.totalorder %s141, %s142
      %p154 = scmp.eq.s32.totalorder %s32, 1
      %p155 = por %p153, %p154
      %p157 = scmp.ne.s32.totalorder %s142, %s156
      %p158 = scmp.eq.s32.totalorder %s32, 0
      %p159 = por %p157, %p158
      %s161 = sadd.s32 %s160, 1
      %p164 = scmp.eq.s32.totalorder %s26, 1
      %p165 = scmp.ne.s32.totalorder %s160, %s162
      %p166 = scmp.eq.s32.totalorder %s26, 0
      %p167 = por %p165, %p166
      %p168 = scmp.ne.s32.totalorder %s160, %s162
      %p169 = scmp.eq.s32.totalorder %s31, 1
      %p170 = por %p168, %p169
      %p171 = scmp.ne.s32.totalorder %s162, %s163
      %p172 = scmp.eq.s32.totalorder %s31, 0
      %p173 = por %p171, %p172
      %p174 = scmp.ne.s32.totalorder %s162, %s163
      %p175 = scmp.eq.s32.totalorder %s32, 1
      %p176 = por %p174, %p175
      %p178 = scmp.ne.s32.totalorder %s163, %s177
      %p179 = scmp.eq.s32.totalorder %s32, 0
      %p180 = por %p178, %p179
      %s182 = sadd.s32 %s181, 1
      %p185 = scmp.eq.s32.totalorder %s26, 1
      %p186 = scmp.ne.s32.totalorder %s181, %s183
      %p187 = scmp.eq.s32.totalorder %s26, 0
      %p188 = por %p186, %p187
      %p189 = scmp.ne.s32.totalorder %s181, %s183
      %p190 = scmp.eq.s32.totalorder %s31, 1
      %p191 = por %p189, %p190
      %p192 = scmp.ne.s32.totalorder %s183, %s184
      %p193 = scmp.eq.s32.totalorder %s31, 0
      %p194 = por %p192, %p193
      %p195 = scmp.ne.s32.totalorder %s183, %s184
      %p196 = scmp.eq.s32.totalorder %s32, 1
      %p197 = por %p195, %p196
      %p199 = scmp.ne.s32.totalorder %s184, %s198
      %p200 = scmp.eq.s32.totalorder %s32, 0
      %p201 = por %p199, %p200
      %s203 = sadd.s32 %s202, 1
      %p206 = scmp.eq.s32.totalorder %s26, 1
      %p207 = scmp.ne.s32.totalorder %s202, %s204
      %p208 = scmp.eq.s32.totalorder %s26, 0
      %p209 = por %p207, %p208
      %p210 = scmp.ne.s32.totalorder %s202, %s204
      %p211 = scmp.eq.s32.totalorder %s31, 1
      %p212 = por %p210, %p211
      %p213 = scmp.ne.s32.totalorder %s204, %s205
      %p214 = scmp.eq.s32.totalorder %s31, 0
      %p215 = por %p213, %p214
      %p216 = scmp.ne.s32.totalorder %s204, %s205
      %p217 = scmp.eq.s32.totalorder %s32, 1
      %p218 = por %p216, %p217
      %p220 = scmp.ne.s32.totalorder %s205, %s219
      %p221 = scmp.eq.s32.totalorder %s32, 0
      %p222 = por %p220, %p221
      %s224 = sadd.s32 %s223, 1
      %p227 = scmp.eq.s32.totalorder %s26, 1
      %p228 = scmp.ne.s32.totalorder %s223, %s225
      %p229 = scmp.eq.s32.totalorder %s26, 0
      %p230 = por %p228, %p229
      %p231 = scmp.ne.s32.totalorder %s223, %s225
      %p232 = scmp.eq.s32.totalorder %s31, 1
      %p233 = por %p231, %p232
      %p234 = scmp.ne.s32.totalorder %s225, %s226
      %p235 = scmp.eq.s32.totalorder %s31, 0
      %p236 = por %p234, %p235
      %p237 = scmp.ne.s32.totalorder %s225, %s226
      %p238 = scmp.eq.s32.totalorder %s32, 1
      %p239 = por %p237, %p238
      %p241 = scmp.ne.s32.totalorder %s226, %s240
      %p242 = scmp.eq.s32.totalorder %s32, 0
      %p243 = por %p241, %p242
      %s245 = sadd.s32 %s244, 1
      %p248 = scmp.eq.s32.totalorder %s26, 1
      %p249 = scmp.ne.s32.totalorder %s244, %s246
      %p250 = scmp.eq.s32.totalorder %s26, 0
      %p251 = por %p249, %p250
      %p252 = scmp.ne.s32.totalorder %s244, %s246
      %p253 = scmp.eq.s32.totalorder %s31, 1
      %p254 = por %p252, %p253
      %p255 = scmp.ne.s32.totalorder %s246, %s247
      %p256 = scmp.eq.s32.totalorder %s31, 0
      %p257 = por %p255, %p256
      %p258 = scmp.ne.s32.totalorder %s246, %s247
      %p259 = scmp.eq.s32.totalorder %s32, 1
      %p260 = por %p258, %p259
      %p262 = scmp.ne.s32.totalorder %s247, %s261
      %p263 = scmp.eq.s32.totalorder %s32, 0
      %p264 = por %p262, %p263
      %s266 = sadd.s32 %s265, 1
      %p269 = scmp.eq.s32.totalorder %s26, 1
      %p270 = scmp.ne.s32.totalorder %s265, %s267
      %p271 = scmp.eq.s32.totalorder %s26, 0
      %p272 = por %p270, %p271
      %p273 = scmp.ne.s32.totalorder %s265, %s267
      %p274 = scmp.eq.s32.totalorder %s31, 1
      %p275 = por %p273, %p274
      %p276 = scmp.ne.s32.totalorder %s267, %s268
      %p277 = scmp.eq.s32.totalorder %s31, 0
      %p278 = por %p276, %p277
      %p279 = scmp.ne.s32.totalorder %s267, %s268
      %p280 = scmp.eq.s32.totalorder %s32, 1
      %p281 = por %p279, %p280
      %p283 = scmp.ne.s32.totalorder %s268, %s282
      %p284 = scmp.eq.s32.totalorder %s32, 0
      %p285 = por %p283, %p284
      %s286 = ssub.s32 %s26, %s33
      %p287 = scmp.eq.s32.totalorder %s286, 0
      %s289 = sadd.s32 %s288, 1
      %s290 = scalar_select %p287, %s288, %s289
      %p293 = pneg %p287
      %p294 = scmp.eq.s32.totalorder %s26, 1
      %p295 = por %p293, %p294
      %p296 = scmp.ne.s32.totalorder %s288, %s291
      %p297 = scmp.eq.s32.totalorder %s26, 0
      %p298 = por %p296, %p297
      %p299 = scmp.ne.s32.totalorder %s288, %s291
      %p300 = scmp.eq.s32.totalorder %s31, 1
      %p301 = por %p299, %p300
      %p302 = scmp.ne.s32.totalorder %s291, %s292
      %p303 = scmp.eq.s32.totalorder %s31, 0
      %p304 = por %p302, %p303
      %p305 = scmp.ne.s32.totalorder %s291, %s292
      %p306 = scmp.eq.s32.totalorder %s32, 1
      %p307 = por %p305, %p306
      %p309 = scmp.ne.s32.totalorder %s292, %s308
      %p310 = scmp.eq.s32.totalorder %s32, 0
      %p311 = por %p309, %p310
      %p312 = scmp.le.s32.totalorder 1, %s26
      %p313 = scmp.lt.s32.totalorder %s26, 3
      %p314 = pnand %p312, %p313
      %p315 = pneg %p314
      // Predicated region
      $region9: #{tpu_custom_call.1} parent=5 // pred_check
        _
      $region10: #{tpu_custom_call.1} parent=5 // pred_check_branch
        %317 = sbr.rel (%p314) target = $region12
      $region11: #{tpu_custom_call.1} parent=5 // pred_region
        %s318 = ssub.s32 %s26, 1
        // Predicated region
        $region13: #{tpu_custom_call.1} parent=11 // pred_check
          %p319 = pneg %p47
        $region14: #{tpu_custom_call.1} parent=11 // pred_check_branch
          %321 = sbr.rel (%p319) target = $region16
        $region15: #{tpu_custom_call.1} parent=11 // pred_region
          %s323 = ssub.s32 128, 128
          %324 = vsyncadd [#allocation3], %s323
          %s326 = sshll.u32 [#allocation2], 4
          %s327 = int_to_ptr.vmem [resolvable:$true] %s326
          %329 = dma.hbm_to_vmem [thread:$0]  %s0, 128, %s327, [#allocation3]
        $region16: #{tpu_custom_call.1} parent=11 // pred_fallthru
          _
        // Predicated region
        $region17: #{tpu_custom_call.1} parent=11 // pred_check
          %p330 = pneg %p68
        $region18: #{tpu_custom_call.1} parent=11 // pred_check_branch
          %332 = sbr.rel (%p330) target = $region20
        $region19: #{tpu_custom_call.1} parent=11 // pred_region
          _
        $region20: #{tpu_custom_call.1} parent=11 // pred_fallthru
          _
        // Predicated region
        $region21: #{tpu_custom_call.1} parent=11 // pred_check
          %p333 = pneg %p89
        $region22: #{tpu_custom_call.1} parent=11 // pred_check_branch
          %335 = sbr.rel (%p333) target = $region24
        $region23: #{tpu_custom_call.1} parent=11 // pred_region
          %s337 = ssub.s32 16, 16
          %338 = vsyncadd [#allocation6], %s337
          %s340 = sshll.u32 [#allocation5], 4
          %s341 = int_to_ptr.vmem [resolvable:$true] %s340
          %343 = dma.hbm_to_vmem [thread:$0]  %s2, 16, %s341, [#allocation6]
        $region24: #{tpu_custom_call.1} parent=11 // pred_fallthru
          _
        // Predicated region
        $region25: #{tpu_custom_call.1} parent=11 // pred_check
          %p344 = pneg %p110
        $region26: #{tpu_custom_call.1} parent=11 // pred_check_branch
          %346 = sbr.rel (%p344) target = $region28
        $region27: #{tpu_custom_call.1} parent=11 // pred_region
          %s348 = ssub.s32 1024, 1024
          %349 = vsyncadd [#allocation6], %s348
          %s350 = sshll.u32 [#allocation7], 4
          %s351 = int_to_ptr.vmem [resolvable:$true] %s350
          %356 = dma.hbm_to_vmem [thread:$0]  %s3, 1024, %s351, [#allocation6], 64, 64, 4
        $region28: #{tpu_custom_call.1} parent=11 // pred_fallthru
          _
        // Predicated region
        $region29: #{tpu_custom_call.1} parent=11 // pred_check
          %p357 = pneg %p131
        $region30: #{tpu_custom_call.1} parent=11 // pred_check_branch
          %359 = sbr.rel (%p357) target = $region32
        $region31: #{tpu_custom_call.1} parent=11 // pred_region
          %s361 = ssub.s32 16, 16
          %362 = vsyncadd [#allocation9], %s361
          %s364 = sshll.u32 [#allocation8], 4
          %s365 = int_to_ptr.vmem [resolvable:$true] %s364
          %367 = dma.hbm_to_vmem [thread:$0]  %s4, 16, %s365, [#allocation9]
        $region32: #{tpu_custom_call.1} parent=11 // pred_fallthru
          _
        // Predicated region
        $region33: #{tpu_custom_call.1} parent=11 // pred_check
          %p368 = pneg %p152
        $region34: #{tpu_custom_call.1} parent=11 // pred_check_branch
          %370 = sbr.rel (%p368) target = $region36
        $region35: #{tpu_custom_call.1} parent=11 // pred_region
          _
        $region36: #{tpu_custom_call.1} parent=11 // pred_fallthru
          _
        // Predicated region
        $region37: #{tpu_custom_call.1} parent=11 // pred_check
          %p371 = pneg %p173
        $region38: #{tpu_custom_call.1} parent=11 // pred_check_branch
          %373 = sbr.rel (%p371) target = $region40
        $region39: #{tpu_custom_call.1} parent=11 // pred_region
          %s375 = ssub.s32 1024, 1024
          %376 = vsyncadd [#allocation9], %s375
          %s377 = sshll.u32 [#allocation10], 4
          %s378 = int_to_ptr.vmem [resolvable:$true] %s377
          %383 = dma.hbm_to_vmem [thread:$0]  %s6, 1024, %s378, [#allocation9], 64, 64, 4
        $region40: #{tpu_custom_call.1} parent=11 // pred_fallthru
          _
        // Predicated region
        $region41: #{tpu_custom_call.1} parent=11 // pred_check
          %p384 = pneg %p194
        $region42: #{tpu_custom_call.1} parent=11 // pred_check_branch
          %386 = sbr.rel (%p384) target = $region44
        $region43: #{tpu_custom_call.1} parent=11 // pred_region
          %s388 = ssub.s32 1024, 1024
          %389 = vsyncadd [#allocation12], %s388
          %s390 = sshll.u32 [#allocation11], 4
          %s391 = int_to_ptr.vmem [resolvable:$true] %s390
          %396 = dma.hbm_to_vmem [thread:$0]  %s7, 1024, %s391, [#allocation12], 64, 64, 4
        $region44: #{tpu_custom_call.1} parent=11 // pred_fallthru
          _
        // Predicated region
        $region45: #{tpu_custom_call.1} parent=11 // pred_check
          %p397 = pneg %p215
        $region46: #{tpu_custom_call.1} parent=11 // pred_check_branch
          %399 = sbr.rel (%p397) target = $region48
        $region47: #{tpu_custom_call.1} parent=11 // pred_region
          %s401 = ssub.s32 16, 16
          %402 = vsyncadd [#allocation12], %s401
          %s404 = sshll.u32 [#allocation13], 4
          %s405 = int_to_ptr.vmem [resolvable:$true] %s404
          %407 = dma.hbm_to_vmem [thread:$0]  %s8, 16, %s405, [#allocation12]
        $region48: #{tpu_custom_call.1} parent=11 // pred_fallthru
          _
        // Predicated region
        $region49: #{tpu_custom_call.1} parent=11 // pred_check
          %p408 = pneg %p236
        $region50: #{tpu_custom_call.1} parent=11 // pred_check_branch
          %410 = sbr.rel (%p408) target = $region52
        $region51: #{tpu_custom_call.1} parent=11 // pred_region
          _
        $region52: #{tpu_custom_call.1} parent=11 // pred_fallthru
          _
        // Predicated region
        $region53: #{tpu_custom_call.1} parent=11 // pred_check
          %p411 = pneg %p257
        $region54: #{tpu_custom_call.1} parent=11 // pred_check_branch
          %413 = sbr.rel (%p411) target = $region56
        $region55: #{tpu_custom_call.1} parent=11 // pred_region
          _
        $region56: #{tpu_custom_call.1} parent=11 // pred_fallthru
          _
        // Predicated region
        $region57: #{tpu_custom_call.1} parent=11 // pred_check
          %p414 = pneg %p278
        $region58: #{tpu_custom_call.1} parent=11 // pred_check_branch
          %416 = sbr.rel (%p414) target = $region60
        $region59: #{tpu_custom_call.1} parent=11 // pred_region
          %s418 = ssub.s32 1024, 1024
          %419 = vsyncadd [#allocation15], %s418
          %s420 = sshll.u32 [#allocation14], 4
          %s421 = int_to_ptr.vmem [resolvable:$true] %s420
          %426 = dma.hbm_to_vmem [thread:$0]  %s11, 1024, %s421, [#allocation15], 64, 64, 4
        $region60: #{tpu_custom_call.1} parent=11 // pred_fallthru
          _
      $region12: #{tpu_custom_call.1} parent=5 // pred_fallthru
        _
      %p427 = scmp.lt.s32.totalorder %s26, 2
      // Predicated region
      $region61: #{tpu_custom_call.1} parent=5 // pred_check
        %p428 = pneg %p427
      $region62: #{tpu_custom_call.1} parent=5 // pred_check_branch
        %430 = sbr.rel (%p428) target = $region64
      $region63: #{tpu_custom_call.1} parent=5 // pred_region
        _
      $region64: #{tpu_custom_call.1} parent=5 // pred_fallthru
        _
      %p431 = scmp.le.s32.totalorder 1, %s26
      %p432 = scmp.lt.s32.totalorder %s26, 3
      %p433 = pnand %p431, %p432
      %p434 = pneg %p433
      // Predicated region
      $region65: #{tpu_custom_call.1} parent=5 // pred_check
        _
      $region66: #{tpu_custom_call.1} parent=5 // pred_check_branch
        %436 = sbr.rel (%p433) target = $region68
      $region67: #{tpu_custom_call.1} parent=5 // pred_region
        %s437 = ssub.s32 %s26, 1
        // Predicated region
        $region69: #{tpu_custom_call.1} parent=67 // pred_check
          %p438 = pneg %p47
        $region70: #{tpu_custom_call.1} parent=67 // pred_check_branch
          %440 = sbr.rel (%p438) target = $region72
        $region71: #{tpu_custom_call.1} parent=67 // pred_region
          %441 = dma.done [#allocation3], 128
        $region72: #{tpu_custom_call.1} parent=67 // pred_fallthru
          _
        // Predicated region
        $region73: #{tpu_custom_call.1} parent=67 // pred_check
          %p442 = pneg %p89
        $region74: #{tpu_custom_call.1} parent=67 // pred_check_branch
          %444 = sbr.rel (%p442) target = $region76
        $region75: #{tpu_custom_call.1} parent=67 // pred_region
          %445 = dma.done [#allocation6], 16
        $region76: #{tpu_custom_call.1} parent=67 // pred_fallthru
          _
        // Predicated region
        $region77: #{tpu_custom_call.1} parent=67 // pred_check
          %p446 = pneg %p110
        $region78: #{tpu_custom_call.1} parent=67 // pred_check_branch
          %448 = sbr.rel (%p446) target = $region80
        $region79: #{tpu_custom_call.1} parent=67 // pred_region
          %449 = dma.done [#allocation6], 1024
        $region80: #{tpu_custom_call.1} parent=67 // pred_fallthru
          _
        // Predicated region
        $region81: #{tpu_custom_call.1} parent=67 // pred_check
          %p450 = pneg %p131
        $region82: #{tpu_custom_call.1} parent=67 // pred_check_branch
          %452 = sbr.rel (%p450) target = $region84
        $region83: #{tpu_custom_call.1} parent=67 // pred_region
          %453 = dma.done [#allocation9], 16
        $region84: #{tpu_custom_call.1} parent=67 // pred_fallthru
          _
        // Predicated region
        $region85: #{tpu_custom_call.1} parent=67 // pred_check
          %p454 = pneg %p173
        $region86: #{tpu_custom_call.1} parent=67 // pred_check_branch
          %456 = sbr.rel (%p454) target = $region88
        $region87: #{tpu_custom_call.1} parent=67 // pred_region
          %457 = dma.done [#allocation9], 1024
        $region88: #{tpu_custom_call.1} parent=67 // pred_fallthru
          _
        // Predicated region
        $region89: #{tpu_custom_call.1} parent=67 // pred_check
          %p458 = pneg %p194
        $region90: #{tpu_custom_call.1} parent=67 // pred_check_branch
          %460 = sbr.rel (%p458) target = $region92
        $region91: #{tpu_custom_call.1} parent=67 // pred_region
          %461 = dma.done [#allocation12], 1024
        $region92: #{tpu_custom_call.1} parent=67 // pred_fallthru
          _
        // Predicated region
        $region93: #{tpu_custom_call.1} parent=67 // pred_check
          %p462 = pneg %p215
        $region94: #{tpu_custom_call.1} parent=67 // pred_check_branch
          %464 = sbr.rel (%p462) target = $region96
        $region95: #{tpu_custom_call.1} parent=67 // pred_region
          %465 = dma.done [#allocation12], 16
        $region96: #{tpu_custom_call.1} parent=67 // pred_fallthru
          _
        // Predicated region
        $region97: #{tpu_custom_call.1} parent=67 // pred_check
          %p466 = pneg %p278
        $region98: #{tpu_custom_call.1} parent=67 // pred_check_branch
          %468 = sbr.rel (%p466) target = $region100
        $region99: #{tpu_custom_call.1} parent=67 // pred_region
          %469 = dma.done [#allocation15], 1024
        $region100: #{tpu_custom_call.1} parent=67 // pred_fallthru
          _
        %p470 = pneg %p47
        %p471 = pneg %p44
        %p472 = pneg %p68
        %p473 = pneg %p65
        %p474 = pneg %p89
        %p475 = pneg %p86
        %p476 = pneg %p110
        %p477 = pneg %p107
        %p478 = pneg %p131
        %p479 = pneg %p128
        %p480 = pneg %p152
        %p481 = pneg %p149
        %p482 = pneg %p173
        %p483 = pneg %p170
        %p484 = pneg %p194
        %p485 = pneg %p191
        %p486 = pneg %p215
        %p487 = pneg %p212
        %p488 = pneg %p236
        %p489 = pneg %p233
        %p490 = pneg %p257
        %p491 = pneg %p254
        %p492 = pneg %p278
        %p493 = pneg %p275
        %p494 = pneg %p304
        %p495 = pneg %p301
        %s496 = sand.u32 %s291, 1
        %s497 = scalar_lea.sflag [#allocation4], %s496
        %s498 = sand.u32 %s291, 1
        %s499 = smul.addr %s498, 8
        %s500 = scalar_lea.vmem [#allocation16], %s499
        %p502 = scmp.eq.s32.totalorder %s31, 0
        // Predicated region
        $region101: #{tpu_custom_call.1} parent=67 // pred_check
          %p503 = pneg %p502
        $region102: #{tpu_custom_call.1} parent=67 // pred_check_branch
          %505 = sbr.rel (%p503) target = $region104
        $region103: #{tpu_custom_call.1} parent=67 // pred_region
          %v506 = vld [vmem:[#allocation2] sm:$0xff]
          %v507 = vld [vmem:[%s1] sm:$0xf]
          %v508 = vld [vmem:[%s1 + $0x4] sm:$0xf]
          %v509 = vld [vmem:[%s1 + $0x8] sm:$0xf]
          %v510 = vld [vmem:[%s1 + $0xc] sm:$0xf]
          %v511 = vld [vmem:[%s1 + $0x10] sm:$0xf]
          %v512 = vld [vmem:[%s1 + $0x14] sm:$0xf]
          %v513 = vld [vmem:[%s1 + $0x18] sm:$0xf]
          %v514 = vld [vmem:[%s1 + $0x1c] sm:$0xf]
          %v515 = vld [vmem:[%s1 + $0x20] sm:$0xf]
          %v516 = vld [vmem:[%s1 + $0x24] sm:$0xf]
          %v517 = vld [vmem:[%s1 + $0x28] sm:$0xf]
          %v518 = vld [vmem:[%s1 + $0x2c] sm:$0xf]
          %v519 = vld [vmem:[%s1 + $0x30] sm:$0xf]
          %v520 = vld [vmem:[%s1 + $0x34] sm:$0xf]
          %v521 = vld [vmem:[%s1 + $0x38] sm:$0xf]
          %v522 = vld [vmem:[%s1 + $0x3c] sm:$0xf]
          %v523 = vld [vmem:[%s1 + $0x40] sm:$0xf]
          %v524 = vld [vmem:[%s1 + $0x44] sm:$0xf]
          %v525 = vld [vmem:[%s1 + $0x48] sm:$0xf]
          %v526 = vld [vmem:[%s1 + $0x4c] sm:$0xf]
          %v527 = vld [vmem:[%s1 + $0x50] sm:$0xf]
          %v528 = vld [vmem:[%s1 + $0x54] sm:$0xf]
          %v529 = vld [vmem:[%s1 + $0x58] sm:$0xf]
          %v530 = vld [vmem:[%s1 + $0x5c] sm:$0xf]
          %v531 = vld [vmem:[%s1 + $0x60] sm:$0xf]
          %v532 = vld [vmem:[%s1 + $0x64] sm:$0xf]
          %v533 = vld [vmem:[%s1 + $0x68] sm:$0xf]
          %v534 = vld [vmem:[%s1 + $0x6c] sm:$0xf]
          %v535 = vld [vmem:[%s1 + $0x70] sm:$0xf]
          %v536 = vld [vmem:[%s1 + $0x74] sm:$0xf]
          %v537 = vld [vmem:[%s1 + $0x78] sm:$0xf]
          %v538 = vld [vmem:[%s1 + $0x7c] sm:$0xf]
          %v539 = vld [vmem:[#allocation5] sm:$0x1]
          %v541 = vlaneseq
          %v542 = vshrl.u32 %v541, 7
          %v543 = vsub.s32 0, %v542
          %v544 = vrot.slane %v539, %v543
          %v547 = vunpack.c.l.b16 %v506
          %v548 = vunpack.c.h.b16 %v506
          %v549 = vpack.c.b16 %v547, %v547
          %v550 = vpack.c.b16 %v548, %v548
          %v585 = vunpack.c.l.b16 %v507
          %v586 = vunpack.c.l.b16 %v508
          %v587 = vunpack.c.l.b16 %v509
          %v588 = vunpack.c.l.b16 %v510
          %v589 = vunpack.c.l.b16 %v511
          %v590 = vunpack.c.l.b16 %v512
          %v591 = vunpack.c.l.b16 %v513
          %v592 = vunpack.c.l.b16 %v514
          %v593 = vunpack.c.l.b16 %v515
          %v594 = vunpack.c.l.b16 %v516
          %v595 = vunpack.c.l.b16 %v517
          %v596 = vunpack.c.l.b16 %v518
          %v597 = vunpack.c.l.b16 %v519
          %v598 = vunpack.c.l.b16 %v520
          %v599 = vunpack.c.l.b16 %v521
          %v600 = vunpack.c.l.b16 %v522
          %v601 = vunpack.c.l.b16 %v523
          %v602 = vunpack.c.l.b16 %v524
          %v603 = vunpack.c.l.b16 %v525
          %v604 = vunpack.c.l.b16 %v526
          %v605 = vunpack.c.l.b16 %v527
          %v606 = vunpack.c.l.b16 %v528
          %v607 = vunpack.c.l.b16 %v529
          %v608 = vunpack.c.l.b16 %v530
          %v609 = vunpack.c.l.b16 %v531
          %v610 = vunpack.c.l.b16 %v532
          %v611 = vunpack.c.l.b16 %v533
          %v612 = vunpack.c.l.b16 %v534
          %v613 = vunpack.c.l.b16 %v535
          %v614 = vunpack.c.l.b16 %v536
          %v615 = vunpack.c.l.b16 %v537
          %v616 = vunpack.c.l.b16 %v538
          %v617 = vpack.c.b16 %v586, %v585
          %v618 = vpack.c.b16 %v588, %v587
          %v619 = vpack.c.b16 %v590, %v589
          %v620 = vpack.c.b16 %v592, %v591
          %v621 = vpack.c.b16 %v594, %v593
          %v622 = vpack.c.b16 %v596, %v595
          %v623 = vpack.c.b16 %v598, %v597
          %v624 = vpack.c.b16 %v600, %v599
          %v625 = vpack.c.b16 %v602, %v601
          %v626 = vpack.c.b16 %v604, %v603
          %v627 = vpack.c.b16 %v606, %v605
          %v628 = vpack.c.b16 %v608, %v607
          %v629 = vpack.c.b16 %v610, %v609
          %v630 = vpack.c.b16 %v612, %v611
          %v631 = vpack.c.b16 %v614, %v613
          %v632 = vpack.c.b16 %v616, %v615
          %649 = vmatprep.subr.bf16.mxu0 0
          %650 = vmatpush1.bf16.msra.mxu0 %v617
          %651 = vmatprep.subr.bf16.mxu0 0
          %652 = vmatpush1.bf16.msra.mxu0 %v618
          %653 = vmatprep.subr.bf16.mxu0 0
          %654 = vmatpush1.bf16.msra.mxu0 %v619
          %655 = vmatprep.subr.bf16.mxu0 0
          %656 = vmatpush1.bf16.msra.mxu0 %v620
          %657 = vmatprep.subr.bf16.mxu0 0
          %658 = vmatpush1.bf16.msra.mxu0 %v621
          %659 = vmatprep.subr.bf16.mxu0 0
          %660 = vmatpush1.bf16.msra.mxu0 %v622
          %661 = vmatprep.subr.bf16.mxu0 0
          %662 = vmatpush1.bf16.msra.mxu0 %v623
          %663 = vmatprep.subr.bf16.mxu0 0
          %664 = vmatpush1.bf16.msra.mxu0 %v624
          %665 = vmatprep.subr.bf16.mxu0 0
          %666 = vmatpush1.bf16.msra.mxu0 %v625
          %667 = vmatprep.subr.bf16.mxu0 0
          %668 = vmatpush1.bf16.msra.mxu0 %v626
          %669 = vmatprep.subr.bf16.mxu0 0
          %670 = vmatpush1.bf16.msra.mxu0 %v627
          %671 = vmatprep.subr.bf16.mxu0 0
          %672 = vmatpush1.bf16.msra.mxu0 %v628
          %673 = vmatprep.subr.bf16.mxu0 0
          %674 = vmatpush1.bf16.msra.mxu0 %v629
          %675 = vmatprep.subr.bf16.mxu0 0
          %676 = vmatpush1.bf16.msra.mxu0 %v630
          %677 = vmatprep.subr.bf16.mxu0 0
          %678 = vmatpush1.bf16.msra.mxu0 %v631
          %679 = vmatprep.subr.bf16.mxu0 0
          %680 = vmatpush1.bf16.msra.mxu0 %v632
          %681 = vmatprep.mubr.bf16.mxu0 %v550
          %682 = vmatmul.mubr.bf16.gmra.mrb[0].mxu0 %v549
          %v683 = vpop.f32.mrb[0].mxu0
          %v684 = vadd.f32 %v544, %v683
          %v685 = vpop.f32.mrb[0].mxu0
          %v686 = vpop.f32.mrb[0].mxu0
          %v687 = vpop.f32.mrb[0].mxu0
          %688 = vdwg.mxu0
          %v689 = vmul.f32 %v684, 0.5
          %v690 = vmul.f32 %v684, 0.044715
          %v691 = vmul.f32 %v690, %v684
          %v692 = vmul.f32 %v691, %v684
          %v693 = vadd.f32 %v684, %v692
          %v694 = vmul.f32 %v693, 0.7978846
          %v695 = vtanh.pop %v694
          %v696 = vadd.f32 %v695, 1.0
          %v697 = vmul.f32 %v689, %v696
          %v698 = vlaneseq
          %v699 = vshrl.u32 %v698, 7
          %v700 = vlaneseq
          %v701 = vand.u32 %v700, 127
          %v702 = vmul.u32 %v699, 4
          %vm703 = vcmp.ge.s32.totalorder %v701, %v702
          %v704 = vadd.s32 %v702, 4
          %vm705 = vcmp.lt.s32.totalorder %v701, %v704
          %vm706 = vmand %vm703, %vm705
          %v707 = vsel %vm706, 0.25, 0.0
          %vm708 = vcmask 64512
          %v710 = vsel %vm708, %v707, 0
          %712 = vmatprep.subr.mxu0 0.0
          %713 = vmatpush1.msra.mxu0 %v697
          %714 = vmatprep.subr.mxu0 0.0
          %715 = vmatpush1.msra.mxu0 0.0
          %716 = vmatprep.subr.mxu0 0.0
          %717 = vmatpush1.msra.mxu0 0.0
          %718 = vmatprep.subr.mxu0 0.0
          %719 = vmatpush1.msra.mxu0 0.0
          %720 = vmatprep.subr.mxu0 0.0
          %721 = vmatpush1.msra.mxu0 0.0
          %722 = vmatprep.subr.mxu0 0.0
          %723 = vmatpush1.msra.mxu0 0.0
          %724 = vmatprep.subr.mxu0 0.0
          %725 = vmatpush1.msra.mxu0 0.0
          %726 = vmatprep.subr.mxu0 0.0
          %727 = vmatpush1.msra.mxu0 0.0
          %728 = vmatprep.subr.mxu0 0.0
          %729 = vmatpush1.msra.mxu0 0.0
          %730 = vmatprep.subr.mxu0 0.0
          %731 = vmatpush1.msra.mxu0 0.0
          %732 = vmatprep.subr.mxu0 0.0
          %733 = vmatpush1.msra.mxu0 0.0
          %734 = vmatprep.subr.mxu0 0.0
          %735 = vmatpush1.msra.mxu0 0.0
          %736 = vmatprep.subr.mxu0 0.0
          %737 = vmatpush1.msra.mxu0 0.0
          %738 = vmatprep.subr.mxu0 0.0
          %739 = vmatpush1.msra.mxu0 0.0
          %740 = vmatprep.subr.mxu0 0.0
          %741 = vmatpush1.msra.mxu0 0.0
          %742 = vmatprep.subr.mxu0 0.0
          %743 = vmatpush1.msra.mxu0 0.0
          %744 = vmatprep.subr.mxu0 0.0
          %745 = vmatpush1.msra.mxu0 0.0
          %746 = vmatprep.subr.mxu0 0.0
          %747 = vmatpush1.msra.mxu0 0.0
          %748 = vmatprep.subr.mxu0 0.0
          %749 = vmatpush1.msra.mxu0 0.0
          %750 = vmatprep.subr.mxu0 0.0
          %751 = vmatpush1.msra.mxu0 0.0
          %752 = vmatprep.subr.mxu0 0.0
          %753 = vmatpush1.msra.mxu0 0.0
          %754 = vmatprep.subr.mxu0 0.0
          %755 = vmatpush1.msra.mxu0 0.0
          %756 = vmatprep.subr.mxu0 0.0
          %757 = vmatpush1.msra.mxu0 0.0
          %758 = vmatprep.subr.mxu0 0.0
          %759 = vmatpush1.msra.mxu0 0.0
          %760 = vmatprep.subr.mxu0 0.0
          %761 = vmatpush1.msra.mxu0 0.0
          %762 = vmatprep.subr.mxu0 0.0
          %763 = vmatpush1.msra.mxu0 0.0
          %764 = vmatprep.subr.mxu0 0.0
          %765 = vmatpush1.msra.mxu0 0.0
          %766 = vmatprep.subr.mxu0 0.0
          %767 = vmatpush1.msra.mxu0 0.0
          %768 = vmatprep.subr.mxu0 0.0
          %769 = vmatpush1.msra.mxu0 0.0
          %770 = vmatprep.subr.mxu0 0.0
          %771 = vmatpush1.msra.mxu0 0.0
          %772 = vmatprep.subr.mxu0 0.0
          %773 = vmatpush1.msra.mxu0 0.0
          %774 = vmatprep.subr.mxu0 0.0
          %775 = vmatpush1.msra.mxu0 0.0
          %776 = vmatprep.mubr.f32.mxu0 0.0
          %777 = vmatmul.mubr.f32.gmra.mrb[0].mxu0 %v710
          %v778 = vpop.f32.mrb[0].mxu0
          %v779 = vadd.f32 0.0, %v778
          %v780 = vpop.f32.mrb[0].mxu0
          %781 = vdwg.mxu0
          %v782 = vpack.c.bf16 %v779, %v779
          %v783 = vld [vmem:[#allocation7] sm:$0xf]
          %v784 = vld [vmem:[#allocation7 + $0x4] sm:$0xf]
          %v785 = vld [vmem:[#allocation7 + $0x8] sm:$0xf]
          %v786 = vld [vmem:[#allocation7 + $0xc] sm:$0xf]
          %v787 = vld [vmem:[#allocation7 + $0x10] sm:$0xf]
          %v788 = vld [vmem:[#allocation7 + $0x14] sm:$0xf]
          %v789 = vld [vmem:[#allocation7 + $0x18] sm:$0xf]
          %v790 = vld [vmem:[#allocation7 + $0x1c] sm:$0xf]
          %v791 = vld [vmem:[#allocation7 + $0x20] sm:$0xf]
          %v792 = vld [vmem:[#allocation7 + $0x24] sm:$0xf]
          %v793 = vld [vmem:[#allocation7 + $0x28] sm:$0xf]
          %v794 = vld [vmem:[#allocation7 + $0x2c] sm:$0xf]
          %v795 = vld [vmem:[#allocation7 + $0x30] sm:$0xf]
          %v796 = vld [vmem:[#allocation7 + $0x34] sm:$0xf]
          %v797 = vld [vmem:[#allocation7 + $0x38] sm:$0xf]
          %v798 = vld [vmem:[#allocation7 + $0x3c] sm:$0xf]
          %v799 = vld [vmem:[#allocation8] sm:$0x1]
          %v801 = vlaneseq
          %v802 = vshrl.u32 %v801, 7
          %v803 = vsub.s32 0, %v802
          %v804 = vrot.slane %v799, %v803
          %v822 = vunpack.c.l.b16 %v783
          %v823 = vunpack.c.l.b16 %v784
          %v824 = vunpack.c.l.b16 %v785
          %v825 = vunpack.c.l.b16 %v786
          %v826 = vunpack.c.l.b16 %v787
          %v827 = vunpack.c.l.b16 %v788
          %v828 = vunpack.c.l.b16 %v789
          %v829 = vunpack.c.l.b16 %v790
          %v830 = vunpack.c.l.b16 %v791
          %v831 = vunpack.c.l.b16 %v792
          %v832 = vunpack.c.l.b16 %v793
          %v833 = vunpack.c.l.b16 %v794
          %v834 = vunpack.c.l.b16 %v795
          %v835 = vunpack.c.l.b16 %v796
          %v836 = vunpack.c.l.b16 %v797
          %v837 = vunpack.c.l.b16 %v798
          %v838 = vpack.c.b16 %v823, %v822
          %v839 = vpack.c.b16 %v825, %v824
          %v840 = vpack.c.b16 %v827, %v826
          %v841 = vpack.c.b16 %v829, %v828
          %v842 = vpack.c.b16 %v831, %v830
          %v843 = vpack.c.b16 %v833, %v832
          %v844 = vpack.c.b16 %v835, %v834
          %v845 = vpack.c.b16 %v837, %v836
          %854 = vmatprep.subr.bf16.mxu0 0
          %855 = vmatpush1.bf16.msra.mxu0 %v838
          %856 = vmatprep.subr.bf16.mxu0 0
          %857 = vmatpush1.bf16.msra.mxu0 %v839
          %858 = vmatprep.subr.bf16.mxu0 0
          %859 = vmatpush1.bf16.msra.mxu0 %v840
          %860 = vmatprep.subr.bf16.mxu0 0
          %861 = vmatpush1.bf16.msra.mxu0 %v841
          %862 = vmatprep.subr.bf16.mxu0 0
          %863 = vmatpush1.bf16.msra.mxu0 %v842
          %864 = vmatprep.subr.bf16.mxu0 0
          %865 = vmatpush1.bf16.msra.mxu0 %v843
          %866 = vmatprep.subr.bf16.mxu0 0
          %867 = vmatpush1.bf16.msra.mxu0 %v844
          %868 = vmatprep.subr.bf16.mxu0 0
          %869 = vmatpush1.bf16.msra.mxu0 %v845
          %870 = vmatprep.subr.bf16.mxu0 0
          %871 = vmatpush1.bf16.msra.mxu0 0
          %872 = vmatprep.subr.bf16.mxu0 0
          %873 = vmatpush1.bf16.msra.mxu0 0
          %874 = vmatprep.subr.bf16.mxu0 0
          %875 = vmatpush1.bf16.msra.mxu0 0
          %876 = vmatprep.subr.bf16.mxu0 0
          %877 = vmatpush1.bf16.msra.mxu0 0
          %878 = vmatprep.subr.bf16.mxu0 0
          %879 = vmatpush1.bf16.msra.mxu0 0
          %880 = vmatprep.subr.bf16.mxu0 0
          %881 = vmatpush1.bf16.msra.mxu0 0
          %882 = vmatprep.subr.bf16.mxu0 0
          %883 = vmatpush1.bf16.msra.mxu0 0
          %884 = vmatprep.subr.bf16.mxu0 0
          %885 = vmatpush1.bf16.msra.mxu0 0
          %886 = vmatprep.mubr.bf16.mxu0 0
          %887 = vmatmul.mubr.bf16.gmra.mrb[0].mxu0 %v782
          %v888 = vpop.f32.mrb[0].mxu0
          %v889 = vadd.f32 %v804, %v888
          %v890 = vpop.f32.mrb[0].mxu0
          %v891 = vpop.f32.mrb[0].mxu0
          %v892 = vpop.f32.mrb[0].mxu0
          %893 = vdwg.mxu0
          %894 = vst [vmem:[%s500] sm:$0xff] %v889
        $region104: #{tpu_custom_call.1} parent=67 // pred_fallthru
          _
        %p895 = scmp.eq.s32.totalorder %s31, 1
        // Predicated region
        $region105: #{tpu_custom_call.1} parent=67 // pred_check
          %p896 = pneg %p895
        $region106: #{tpu_custom_call.1} parent=67 // pred_check_branch
          %898 = sbr.rel (%p896) target = $region108
        $region107: #{tpu_custom_call.1} parent=67 // pred_region
          %v899 = vld [vmem:[%s5] sm:$0xff]
          %v900 = vld [vmem:[%s5 + $0x8] sm:$0xff]
          %v901 = vld [vmem:[%s5 + $0x10] sm:$0xff]
          %v902 = vld [vmem:[%s5 + $0x18] sm:$0xff]
          %v903 = vld [vmem:[%s5 + $0x20] sm:$0xff]
          %v904 = vld [vmem:[%s5 + $0x28] sm:$0xff]
          %v905 = vld [vmem:[%s5 + $0x30] sm:$0xff]
          %v906 = vld [vmem:[%s5 + $0x38] sm:$0xff]
          %v907 = vld [vmem:[%s5 + $0x40] sm:$0xff]
          %v908 = vld [vmem:[%s5 + $0x48] sm:$0xff]
          %v909 = vld [vmem:[%s5 + $0x50] sm:$0xff]
          %v910 = vld [vmem:[%s5 + $0x58] sm:$0xff]
          %v911 = vld [vmem:[%s5 + $0x60] sm:$0xff]
          %v912 = vld [vmem:[%s5 + $0x68] sm:$0xff]
          %v913 = vld [vmem:[%s5 + $0x70] sm:$0xff]
          %v914 = vld [vmem:[%s5 + $0x78] sm:$0xff]
          %v915 = vld [vmem:[%s5 + $0x80] sm:$0xff]
          %v916 = vld [vmem:[%s5 + $0x88] sm:$0xff]
          %v917 = vld [vmem:[%s5 + $0x90] sm:$0xff]
          %v918 = vld [vmem:[%s5 + $0x98] sm:$0x3]
          %v919 = vlaneseq
          %v920 = vand.u32 %v919, 127
          %921 = vset.pattern.permute.xlu0 0
          %922 = vperm.xlu0 %921, %v899
          %v923 = vpop.permute.xlu0 %922
          %924 = vset.pattern.permute.xlu0 0
          %925 = vperm.xlu0 %924, %v900
          %v926 = vpop.permute.xlu0 %925
          %927 = vset.pattern.permute.xlu0 0
          %928 = vperm.xlu0 %927, %v901
          %v929 = vpop.permute.xlu0 %928
          %930 = vset.pattern.permute.xlu0 0
          %931 = vperm.xlu0 %930, %v902
          %v932 = vpop.permute.xlu0 %931
          %933 = vset.pattern.permute.xlu0 0
          %934 = vperm.xlu0 %933, %v903
          %v935 = vpop.permute.xlu0 %934
          %936 = vset.pattern.permute.xlu0 0
          %937 = vperm.xlu0 %936, %v904
          %v938 = vpop.permute.xlu0 %937
          %939 = vset.pattern.permute.xlu0 0
          %940 = vperm.xlu0 %939, %v905
          %v941 = vpop.permute.xlu0 %940
          %942 = vset.pattern.permute.xlu0 0
          %943 = vperm.xlu0 %942, %v906
          %v944 = vpop.permute.xlu0 %943
          %945 = vset.pattern.permute.xlu0 0
          %946 = vperm.xlu0 %945, %v907
          %v947 = vpop.permute.xlu0 %946
          %948 = vset.pattern.permute.xlu0 0
          %949 = vperm.xlu0 %948, %v908
          %v950 = vpop.permute.xlu0 %949
          %951 = vset.pattern.permute.xlu0 0
          %952 = vperm.xlu0 %951, %v909
          %v953 = vpop.permute.xlu0 %952
          %954 = vset.pattern.permute.xlu0 0
          %955 = vperm.xlu0 %954, %v910
          %v956 = vpop.permute.xlu0 %955
          %957 = vset.pattern.permute.xlu0 0
          %958 = vperm.xlu0 %957, %v911
          %v959 = vpop.permute.xlu0 %958
          %960 = vset.pattern.permute.xlu0 0
          %961 = vperm.xlu0 %960, %v912
          %v962 = vpop.permute.xlu0 %961
          %963 = vset.pattern.permute.xlu0 0
          %964 = vperm.xlu0 %963, %v913
          %v965 = vpop.permute.xlu0 %964
          %966 = vset.pattern.permute.xlu0 0
          %967 = vperm.xlu0 %966, %v914
          %v968 = vpop.permute.xlu0 %967
          %969 = vset.pattern.permute.xlu0 0
          %970 = vperm.xlu0 %969, %v915
          %v971 = vpop.permute.xlu0 %970
          %972 = vset.pattern.permute.xlu0 0
          %973 = vperm.xlu0 %972, %v916
          %v974 = vpop.permute.xlu0 %973
          %975 = vset.pattern.permute.xlu0 0
          %976 = vperm.xlu0 %975, %v917
          %v977 = vpop.permute.xlu0 %976
          %978 = vset.pattern.permute.xlu0 0
          %979 = vperm.xlu0 %978, %v918
          %v980 = vpop.permute.xlu0 %979
          %vm981 = vcmp.eq.s32.totalorder %v920, %v923
          %vm982 = vcmp.eq.s32.totalorder %v920, %v926
          %vm983 = vcmp.eq.s32.totalorder %v920, %v929
          %vm984 = vcmp.eq.s32.totalorder %v920, %v932
          %vm985 = vcmp.eq.s32.totalorder %v920, %v935
          %vm986 = vcmp.eq.s32.totalorder %v920, %v938
          %vm987 = vcmp.eq.s32.totalorder %v920, %v941
          %vm988 = vcmp.eq.s32.totalorder %v920, %v944
          %vm989 = vcmp.eq.s32.totalorder %v920, %v947
          %vm990 = vcmp.eq.s32.totalorder %v920, %v950
          %vm991 = vcmp.eq.s32.totalorder %v920, %v953
          %vm992 = vcmp.eq.s32.totalorder %v920, %v956
          %vm993 = vcmp.eq.s32.totalorder %v920, %v959
          %vm994 = vcmp.eq.s32.totalorder %v920, %v962
          %vm995 = vcmp.eq.s32.totalorder %v920, %v965
          %vm996 = vcmp.eq.s32.totalorder %v920, %v968
          %vm997 = vcmp.eq.s32.totalorder %v920, %v971
          %vm998 = vcmp.eq.s32.totalorder %v920, %v974
          %vm999 = vcmp.eq.s32.totalorder %v920, %v977
          %vm1000 = vcmp.eq.s32.totalorder %v920, %v980
          %v1001 = vsel %vm981, 1.0, 0.0
          %v1002 = vsel %vm982, 1.0, 0.0
          %v1003 = vsel %vm983, 1.0, 0.0
          %v1004 = vsel %vm984, 1.0, 0.0
          %v1005 = vsel %vm985, 1.0, 0.0
          %v1006 = vsel %vm986, 1.0, 0.0
          %v1007 = vsel %vm987, 1.0, 0.0
          %v1008 = vsel %vm988, 1.0, 0.0
          %v1009 = vsel %vm989, 1.0, 0.0
          %v1010 = vsel %vm990, 1.0, 0.0
          %v1011 = vsel %vm991, 1.0, 0.0
          %v1012 = vsel %vm992, 1.0, 0.0
          %v1013 = vsel %vm993, 1.0, 0.0
          %v1014 = vsel %vm994, 1.0, 0.0
          %v1015 = vsel %vm995, 1.0, 0.0
          %v1016 = vsel %vm996, 1.0, 0.0
          %v1017 = vsel %vm997, 1.0, 0.0
          %v1018 = vsel %vm998, 1.0, 0.0
          %v1019 = vsel %vm999, 1.0, 0.0
          %v1020 = vsel %vm1000, 1.0, 0.0
          %v1021 = vpack.c.bf16 %v1002, %v1001
          %v1022 = vpack.c.bf16 %v1004, %v1003
          %v1023 = vpack.c.bf16 %v1006, %v1005
          %v1024 = vpack.c.bf16 %v1008, %v1007
          %v1025 = vpack.c.bf16 %v1010, %v1009
          %v1026 = vpack.c.bf16 %v1012, %v1011
          %v1027 = vpack.c.bf16 %v1014, %v1013
          %v1028 = vpack.c.bf16 %v1016, %v1015
          %v1029 = vpack.c.bf16 %v1018, %v1017
          %v1030 = vpack.c.bf16 %v1020, %v1019
          %v1031 = vld [vmem:[#allocation10] sm:$0xf]
          %v1032 = vld [vmem:[#allocation10 + $0x4] sm:$0xf]
          %v1033 = vld [vmem:[#allocation10 + $0x8] sm:$0xf]
          %v1034 = vld [vmem:[#allocation10 + $0xc] sm:$0xf]
          %v1035 = vld [vmem:[#allocation10 + $0x10] sm:$0xf]
          %v1036 = vld [vmem:[#allocation10 + $0x14] sm:$0xf]
          %v1037 = vld [vmem:[#allocation10 + $0x18] sm:$0xf]
          %v1038 = vld [vmem:[#allocation10 + $0x1c] sm:$0xf]
          %v1039 = vld [vmem:[#allocation10 + $0x20] sm:$0xf]
          %v1040 = vld [vmem:[#allocation10 + $0x24] sm:$0xf]
          %v1041 = vld [vmem:[#allocation10 + $0x28] sm:$0xf]
          %v1042 = vld [vmem:[#allocation10 + $0x2c] sm:$0xf]
          %v1043 = vld [vmem:[#allocation10 + $0x30] sm:$0xf]
          %v1044 = vld [vmem:[#allocation10 + $0x34] sm:$0xf]
          %v1045 = vld [vmem:[#allocation10 + $0x38] sm:$0xf]
          %v1046 = vld [vmem:[#allocation10 + $0x3c] sm:$0xf]
          %v1063 = vunpack.c.l.b16 %v1031
          %v1064 = vunpack.c.l.b16 %v1032
          %v1065 = vunpack.c.l.b16 %v1033
          %v1066 = vunpack.c.l.b16 %v1034
          %v1067 = vunpack.c.l.b16 %v1035
          %v1068 = vunpack.c.l.b16 %v1036
          %v1069 = vunpack.c.l.b16 %v1037
          %v1070 = vunpack.c.l.b16 %v1038
          %v1071 = vunpack.c.l.b16 %v1039
          %v1072 = vunpack.c.l.b16 %v1040
          %v1073 = vunpack.c.l.b16 %v1041
          %v1074 = vunpack.c.l.b16 %v1042
          %v1075 = vunpack.c.l.b16 %v1043
          %v1076 = vunpack.c.l.b16 %v1044
          %v1077 = vunpack.c.l.b16 %v1045
          %v1078 = vunpack.c.l.b16 %v1046
          %v1079 = vpack.c.b16 %v1064, %v1063
          %v1080 = vpack.c.b16 %v1066, %v1065
          %v1081 = vpack.c.b16 %v1068, %v1067
          %v1082 = vpack.c.b16 %v1070, %v1069
          %v1083 = vpack.c.b16 %v1072, %v1071
          %v1084 = vpack.c.b16 %v1074, %v1073
          %v1085 = vpack.c.b16 %v1076, %v1075
          %v1086 = vpack.c.b16 %v1078, %v1077
          %1095 = vmatprep.subr.bf16.mxu0 0
          %1096 = vmatpush1.bf16.msra.mxu0 %v1079
          %1097 = vmatprep.subr.bf16.mxu0 0
          %1098 = vmatpush1.bf16.msra.mxu0 %v1080
          %1099 = vmatprep.subr.bf16.mxu0 0
          %1100 = vmatpush1.bf16.msra.mxu0 %v1081
          %1101 = vmatprep.subr.bf16.mxu0 0
          %1102 = vmatpush1.bf16.msra.mxu0 %v1082
          %1103 = vmatprep.subr.bf16.mxu0 0
          %1104 = vmatpush1.bf16.msra.mxu0 %v1083
          %1105 = vmatprep.subr.bf16.mxu0 0
          %1106 = vmatpush1.bf16.msra.mxu0 %v1084
          %1107 = vmatprep.subr.bf16.mxu0 0
          %1108 = vmatpush1.bf16.msra.mxu0 %v1085
          %1109 = vmatprep.subr.bf16.mxu0 0
          %1110 = vmatpush1.bf16.msra.mxu0 %v1086
          %1111 = vmatprep.subr.bf16.mxu0 0
          %1112 = vmatpush1.bf16.msra.mxu0 0
          %1113 = vmatprep.subr.bf16.mxu0 0
          %1114 = vmatpush1.bf16.msra.mxu0 0
          %1115 = vmatprep.subr.bf16.mxu0 0
          %1116 = vmatpush1.bf16.msra.mxu0 0
          %1117 = vmatprep.subr.bf16.mxu0 0
          %1118 = vmatpush1.bf16.msra.mxu0 0
          %1119 = vmatprep.subr.bf16.mxu0 0
          %1120 = vmatpush1.bf16.msra.mxu0 0
          %1121 = vmatprep.subr.bf16.mxu0 0
          %1122 = vmatpush1.bf16.msra.mxu0 0
          %1123 = vmatprep.subr.bf16.mxu0 0
          %1124 = vmatpush1.bf16.msra.mxu0 0
          %1125 = vmatprep.subr.bf16.mxu0 0
          %1126 = vmatpush1.bf16.msra.mxu0 0
          %1127 = vmatprep.mubr.bf16.mxu0 0
          %1128 = vmatmul.mubr.bf16.gmra.mrb[0].mxu0 %v1021
          %v1129 = vpop.f32.mrb[0].mxu0
          %v1130 = vadd.f32 0.0, %v1129
          %v1131 = vpop.f32.mrb[0].mxu0
          %v1132 = vpop.f32.mrb[0].mxu0
          %v1133 = vadd.f32 0.0, %v1132
          %v1134 = vpop.f32.mrb[0].mxu0
          %1135 = vmatprep.mubr.bf16.mxu0 0
          %1136 = vmatmul.mubr.bf16.gmra.mrb[0].mxu0 %v1022
          %v1137 = vpop.f32.mrb[0].mxu0
          %v1138 = vadd.f32 0.0, %v1137
          %v1139 = vpop.f32.mrb[0].mxu0
          %v1140 = vpop.f32.mrb[0].mxu0
          %v1141 = vadd.f32 0.0, %v1140
          %v1142 = vpop.f32.mrb[0].mxu0
          %1143 = vmatprep.mubr.bf16.mxu0 0
          %1144 = vmatmul.mubr.bf16.gmra.mrb[0].mxu0 %v1023
          %v1145 = vpop.f32.mrb[0].mxu0
          %v1146 = vadd.f32 0.0, %v1145
          %v1147 = vpop.f32.mrb[0].mxu0
          %v1148 = vpop.f32.mrb[0].mxu0
          %v1149 = vadd.f32 0.0, %v1148
          %v1150 = vpop.f32.mrb[0].mxu0
          %1151 = vmatprep.mubr.bf16.mxu0 0
          %1152 = vmatmul.mubr.bf16.gmra.mrb[0].mxu0 %v1024
          %v1153 = vpop.f32.mrb[0].mxu0
          %v1154 = vadd.f32 0.0, %v1153
          %v1155 = vpop.f32.mrb[0].mxu0
          %v1156 = vpop.f32.mrb[0].mxu0
          %v1157 = vadd.f32 0.0, %v1156
          %v1158 = vpop.f32.mrb[0].mxu0
          %1159 = vmatprep.mubr.bf16.mxu0 0
          %1160 = vmatmul.mubr.bf16.gmra.mrb[0].mxu0 %v1025
          %v1161 = vpop.f32.mrb[0].mxu0
          %v1162 = vadd.f32 0.0, %v1161
          %v1163 = vpop.f32.mrb[0].mxu0
          %v1164 = vpop.f32.mrb[0].mxu0
          %v1165 = vadd.f32 0.0, %v1164
          %v1166 = vpop.f32.mrb[0].mxu0
          %1167 = vmatprep.mubr.bf16.mxu0 0
          %1168 = vmatmul.mubr.bf16.gmra.mrb[0].mxu0 %v1026
          %v1169 = vpop.f32.mrb[0].mxu0
          %v1170 = vadd.f32 0.0, %v1169
          %v1171 = vpop.f32.mrb[0].mxu0
          %v1172 = vpop.f32.mrb[0].mxu0
          %v1173 = vadd.f32 0.0, %v1172
          %v1174 = vpop.f32.mrb[0].mxu0
          %1175 = vmatprep.mubr.bf16.mxu0 0
          %1176 = vmatmul.mubr.bf16.gmra.mrb[0].mxu0 %v1027
          %v1177 = vpop.f32.mrb[0].mxu0
          %v1178 = vadd.f32 0.0, %v1177
          %v1179 = vpop.f32.mrb[0].mxu0
          %v1180 = vpop.f32.mrb[0].mxu0
          %v1181 = vadd.f32 0.0, %v1180
          %v1182 = vpop.f32.mrb[0].mxu0
          %1183 = vmatprep.mubr.bf16.mxu0 0
          %1184 = vmatmul.mubr.bf16.gmra.mrb[0].mxu0 %v1028
          %v1185 = vpop.f32.mrb[0].mxu0
          %v1186 = vadd.f32 0.0, %v1185
          %v1187 = vpop.f32.mrb[0].mxu0
          %v1188 = vpop.f32.mrb[0].mxu0
          %v1189 = vadd.f32 0.0, %v1188
          %v1190 = vpop.f32.mrb[0].mxu0
          %1191 = vmatprep.mubr.bf16.mxu0 0
          %1192 = vmatmul.mubr.bf16.gmra.mrb[0].mxu0 %v1029
          %v1193 = vpop.f32.mrb[0].mxu0
          %v1194 = vadd.f32 0.0, %v1193
          %v1195 = vpop.f32.mrb[0].mxu0
          %v1196 = vpop.f32.mrb[0].mxu0
          %v1197 = vadd.f32 0.0, %v1196
          %v1198 = vpop.f32.mrb[0].mxu0
          %1199 = vmatprep.mubr.bf16.mxu0 0
          %1200 = vmatmul.mubr.bf16.gmra.mrb[0].mxu0 %v1030
          %v1201 = vpop.f32.mrb[0].mxu0
          %v1202 = vadd.f32 0.0, %v1201
          %v1203 = vpop.f32.mrb[0].mxu0
          %v1204 = vpop.f32.mrb[0].mxu0
          %v1205 = vadd.f32 0.0, %v1204
          %v1206 = vpop.f32.mrb[0].mxu0
          %1207 = vdwg.mxu0
          %v1208 = vpack.c.bf16 %v1133, %v1130
          %v1209 = vpack.c.bf16 %v1141, %v1138
          %v1210 = vpack.c.bf16 %v1149, %v1146
          %v1211 = vpack.c.bf16 %v1157, %v1154
          %v1212 = vpack.c.bf16 %v1165, %v1162
          %v1213 = vpack.c.bf16 %v1173, %v1170
          %v1214 = vpack.c.bf16 %v1181, %v1178
          %v1215 = vpack.c.bf16 %v1189, %v1186
          %v1216 = vpack.c.bf16 %v1197, %v1194
          %v1217 = vpack.c.bf16 %v1205, %v1202
          %v1218 = vld [vmem:[#allocation11] sm:$0xf]
          %v1219 = vld [vmem:[#allocation11 + $0x4] sm:$0xf]
          %v1220 = vld [vmem:[#allocation11 + $0x8] sm:$0xf]
          %v1221 = vld [vmem:[#allocation11 + $0xc] sm:$0xf]
          %v1222 = vld [vmem:[#allocation11 + $0x10] sm:$0xf]
          %v1223 = vld [vmem:[#allocation11 + $0x14] sm:$0xf]
          %v1224 = vld [vmem:[#allocation11 + $0x18] sm:$0xf]
          %v1225 = vld [vmem:[#allocation11 + $0x1c] sm:$0xf]
          %v1226 = vld [vmem:[#allocation11 + $0x20] sm:$0xf]
          %v1227 = vld [vmem:[#allocation11 + $0x24] sm:$0xf]
          %v1228 = vld [vmem:[#allocation11 + $0x28] sm:$0xf]
          %v1229 = vld [vmem:[#allocation11 + $0x2c] sm:$0xf]
          %v1230 = vld [vmem:[#allocation11 + $0x30] sm:$0xf]
          %v1231 = vld [vmem:[#allocation11 + $0x34] sm:$0xf]
          %v1232 = vld [vmem:[#allocation11 + $0x38] sm:$0xf]
          %v1233 = vld [vmem:[#allocation11 + $0x3c] sm:$0xf]
          %v1234 = vld [vmem:[#allocation13] sm:$0x1]
          %v1236 = vlaneseq
          %v1237 = vshrl.u32 %v1236, 7
          %v1238 = vsub.s32 0, %v1237
          %v1239 = vrot.slane %v1234, %v1238
          %v1257 = vunpack.c.l.b16 %v1218
          %v1258 = vunpack.c.l.b16 %v1219
          %v1259 = vunpack.c.l.b16 %v1220
          %v1260 = vunpack.c.l.b16 %v1221
          %v1261 = vunpack.c.l.b16 %v1222
          %v1262 = vunpack.c.l.b16 %v1223
          %v1263 = vunpack.c.l.b16 %v1224
          %v1264 = vunpack.c.l.b16 %v1225
          %v1265 = vunpack.c.l.b16 %v1226
          %v1266 = vunpack.c.l.b16 %v1227
          %v1267 = vunpack.c.l.b16 %v1228
          %v1268 = vunpack.c.l.b16 %v1229
          %v1269 = vunpack.c.l.b16 %v1230
          %v1270 = vunpack.c.l.b16 %v1231
          %v1271 = vunpack.c.l.b16 %v1232
          %v1272 = vunpack.c.l.b16 %v1233
          %v1273 = vpack.c.b16 %v1258, %v1257
          %v1274 = vpack.c.b16 %v1260, %v1259
          %v1275 = vpack.c.b16 %v1262, %v1261
          %v1276 = vpack.c.b16 %v1264, %v1263
          %v1277 = vpack.c.b16 %v1266, %v1265
          %v1278 = vpack.c.b16 %v1268, %v1267
          %v1279 = vpack.c.b16 %v1270, %v1269
          %v1280 = vpack.c.b16 %v1272, %v1271
          %1289 = vmatprep.subr.bf16.mxu0 0
          %1290 = vmatpush1.bf16.msra.mxu0 %v1273
          %1291 = vmatprep.subr.bf16.mxu0 0
          %1292 = vmatpush1.bf16.msra.mxu0 %v1274
          %1293 = vmatprep.subr.bf16.mxu0 0
          %1294 = vmatpush1.bf16.msra.mxu0 %v1275
          %1295 = vmatprep.subr.bf16.mxu0 0
          %1296 = vmatpush1.bf16.msra.mxu0 %v1276
          %1297 = vmatprep.subr.bf16.mxu0 0
          %1298 = vmatpush1.bf16.msra.mxu0 %v1277
          %1299 = vmatprep.subr.bf16.mxu0 0
          %1300 = vmatpush1.bf16.msra.mxu0 %v1278
          %1301 = vmatprep.subr.bf16.mxu0 0
          %1302 = vmatpush1.bf16.msra.mxu0 %v1279
          %1303 = vmatprep.subr.bf16.mxu0 0
          %1304 = vmatpush1.bf16.msra.mxu0 %v1280
          %1305 = vmatprep.subr.bf16.mxu0 0
          %1306 = vmatpush1.bf16.msra.mxu0 0
          %1307 = vmatprep.subr.bf16.mxu0 0
          %1308 = vmatpush1.bf16.msra.mxu0 0
          %1309 = vmatprep.subr.bf16.mxu0 0
          %1310 = vmatpush1.bf16.msra.mxu0 0
          %1311 = vmatprep.subr.bf16.mxu0 0
          %1312 = vmatpush1.bf16.msra.mxu0 0
          %1313 = vmatprep.subr.bf16.mxu0 0
          %1314 = vmatpush1.bf16.msra.mxu0 0
          %1315 = vmatprep.subr.bf16.mxu0 0
          %1316 = vmatpush1.bf16.msra.mxu0 0
          %1317 = vmatprep.subr.bf16.mxu0 0
          %1318 = vmatpush1.bf16.msra.mxu0 0
          %1319 = vmatprep.subr.bf16.mxu0 0
          %1320 = vmatpush1.bf16.msra.mxu0 0
          %1321 = vmatprep.mubr.bf16.mxu0 0
          %1322 = vmatmul.mubr.bf16.gmra.mrb[0].mxu0 %v1208
          %v1323 = vpop.f32.mrb[0].mxu0
          %v1324 = vadd.f32 %v1239, %v1323
          %v1325 = vpop.f32.mrb[0].mxu0
          %v1326 = vpop.f32.mrb[0].mxu0
          %v1327 = vadd.f32 %v1239, %v1326
          %v1328 = vpop.f32.mrb[0].mxu0
          %1329 = vmatprep.mubr.bf16.mxu0 0
          %1330 = vmatmul.mubr.bf16.gmra.mrb[0].mxu0 %v1209
          %v1331 = vpop.f32.mrb[0].mxu0
          %v1332 = vadd.f32 %v1239, %v1331
          %v1333 = vpop.f32.mrb[0].mxu0
          %v1334 = vpop.f32.mrb[0].mxu0
          %v1335 = vadd.f32 %v1239, %v1334
          %v1336 = vpop.f32.mrb[0].mxu0
          %1337 = vmatprep.mubr.bf16.mxu0 0
          %1338 = vmatmul.mubr.bf16.gmra.mrb[0].mxu0 %v1210
          %v1339 = vpop.f32.mrb[0].mxu0
          %v1340 = vadd.f32 %v1239, %v1339
          %v1341 = vpop.f32.mrb[0].mxu0
          %v1342 = vpop.f32.mrb[0].mxu0
          %v1343 = vadd.f32 %v1239, %v1342
          %v1344 = vpop.f32.mrb[0].mxu0
          %1345 = vmatprep.mubr.bf16.mxu0 0
          %1346 = vmatmul.mubr.bf16.gmra.mrb[0].mxu0 %v1211
          %v1347 = vpop.f32.mrb[0].mxu0
          %v1348 = vadd.f32 %v1239, %v1347
          %v1349 = vpop.f32.mrb[0].mxu0
          %v1350 = vpop.f32.mrb[0].mxu0
          %v1351 = vadd.f32 %v1239, %v1350
          %v1352 = vpop.f32.mrb[0].mxu0
          %1353 = vmatprep.mubr.bf16.mxu0 0
          %1354 = vmatmul.mubr.bf16.gmra.mrb[0].mxu0 %v1212
          %v1355 = vpop.f32.mrb[0].mxu0
          %v1356 = vadd.f32 %v1239, %v1355
          %v1357 = vpop.f32.mrb[0].mxu0
          %v1358 = vpop.f32.mrb[0].mxu0
          %v1359 = vadd.f32 %v1239, %v1358
          %v1360 = vpop.f32.mrb[0].mxu0
          %1361 = vmatprep.mubr.bf16.mxu0 0
          %1362 = vmatmul.mubr.bf16.gmra.mrb[0].mxu0 %v1213
          %v1363 = vpop.f32.mrb[0].mxu0
          %v1364 = vadd.f32 %v1239, %v1363
          %v1365 = vpop.f32.mrb[0].mxu0
          %v1366 = vpop.f32.mrb[0].mxu0
          %v1367 = vadd.f32 %v1239, %v1366
          %v1368 = vpop.f32.mrb[0].mxu0
          %1369 = vmatprep.mubr.bf16.mxu0 0
          %1370 = vmatmul.mubr.bf16.gmra.mrb[0].mxu0 %v1214
          %v1371 = vpop.f32.mrb[0].mxu0
          %v1372 = vadd.f32 %v1239, %v1371
          %v1373 = vpop.f32.mrb[0].mxu0
          %v1374 = vpop.f32.mrb[0].mxu0
          %v1375 = vadd.f32 %v1239, %v1374
          %v1376 = vpop.f32.mrb[0].mxu0
          %1377 = vmatprep.mubr.bf16.mxu0 0
          %1378 = vmatmul.mubr.bf16.gmra.mrb[0].mxu0 %v1215
          %v1379 = vpop.f32.mrb[0].mxu0
          %v1380 = vadd.f32 %v1239, %v1379
          %v1381 = vpop.f32.mrb[0].mxu0
          %v1382 = vpop.f32.mrb[0].mxu0
          %v1383 = vadd.f32 %v1239, %v1382
          %v1384 = vpop.f32.mrb[0].mxu0
          %1385 = vmatprep.mubr.bf16.mxu0 0
          %1386 = vmatmul.mubr.bf16.gmra.mrb[0].mxu0 %v1216
          %v1387 = vpop.f32.mrb[0].mxu0
          %v1388 = vadd.f32 %v1239, %v1387
          %v1389 = vpop.f32.mrb[0].mxu0
          %v1390 = vpop.f32.mrb[0].mxu0
          %v1391 = vadd.f32 %v1239, %v1390
          %v1392 = vpop.f32.mrb[0].mxu0
          %1393 = vmatprep.mubr.bf16.mxu0 0
          %1394 = vmatmul.mubr.bf16.gmra.mrb[0].mxu0 %v1217
          %v1395 = vpop.f32.mrb[0].mxu0
          %v1396 = vadd.f32 %v1239, %v1395
          %v1397 = vpop.f32.mrb[0].mxu0
          %v1398 = vpop.f32.mrb[0].mxu0
          %v1399 = vadd.f32 %v1239, %v1398
          %v1400 = vpop.f32.mrb[0].mxu0
          %1401 = vdwg.mxu0
          %v1402 = vmul.f32 %v1324, 0.5
          %v1403 = vmul.f32 %v1327, 0.5
          %v1404 = vmul.f32 %v1332, 0.5
          %v1405 = vmul.f32 %v1335, 0.5
          %v1406 = vmul.f32 %v1340, 0.5
          %v1407 = vmul.f32 %v1343, 0.5
          %v1408 = vmul.f32 %v1348, 0.5
          %v1409 = vmul.f32 %v1351, 0.5
          %v1410 = vmul.f32 %v1356, 0.5
          %v1411 = vmul.f32 %v1359, 0.5
          %v1412 = vmul.f32 %v1364, 0.5
          %v1413 = vmul.f32 %v1367, 0.5
          %v1414 = vmul.f32 %v1372, 0.5
          %v1415 = vmul.f32 %v1375, 0.5
          %v1416 = vmul.f32 %v1380, 0.5
          %v1417 = vmul.f32 %v1383, 0.5
          %v1418 = vmul.f32 %v1388, 0.5
          %v1419 = vmul.f32 %v1391, 0.5
          %v1420 = vmul.f32 %v1396, 0.5
          %v1421 = vmul.f32 %v1399, 0.5
          %v1422 = vmul.f32 %v1324, 0.044715
          %v1423 = vmul.f32 %v1327, 0.044715
          %v1424 = vmul.f32 %v1332, 0.044715
          %v1425 = vmul.f32 %v1335, 0.044715
          %v1426 = vmul.f32 %v1340, 0.044715
          %v1427 = vmul.f32 %v1343, 0.044715
          %v1428 = vmul.f32 %v1348, 0.044715
          %v1429 = vmul.f32 %v1351, 0.044715
          %v1430 = vmul.f32 %v1356, 0.044715
          %v1431 = vmul.f32 %v1359, 0.044715
          %v1432 = vmul.f32 %v1364, 0.044715
          %v1433 = vmul.f32 %v1367, 0.044715
          %v1434 = vmul.f32 %v1372, 0.044715
          %v1435 = vmul.f32 %v1375, 0.044715
          %v1436 = vmul.f32 %v1380, 0.044715
          %v1437 = vmul.f32 %v1383, 0.044715
          %v1438 = vmul.f32 %v1388, 0.044715
          %v1439 = vmul.f32 %v1391, 0.044715
          %v1440 = vmul.f32 %v1396, 0.044715
          %v1441 = vmul.f32 %v1399, 0.044715
          %v1442 = vmul.f32 %v1422, %v1324
          %v1443 = vmul.f32 %v1423, %v1327
          %v1444 = vmul.f32 %v1424, %v1332
          %v1445 = vmul.f32 %v1425, %v1335
          %v1446 = vmul.f32 %v1426, %v1340
          %v1447 = vmul.f32 %v1427, %v1343
          %v1448 = vmul.f32 %v1428, %v1348
          %v1449 = vmul.f32 %v1429, %v1351
          %v1450 = vmul.f32 %v1430, %v1356
          %v1451 = vmul.f32 %v1431, %v1359
          %v1452 = vmul.f32 %v1432, %v1364
          %v1453 = vmul.f32 %v1433, %v1367
          %v1454 = vmul.f32 %v1434, %v1372
          %v1455 = vmul.f32 %v1435, %v1375
          %v1456 = vmul.f32 %v1436, %v1380
          %v1457 = vmul.f32 %v1437, %v1383
          %v1458 = vmul.f32 %v1438, %v1388
          %v1459 = vmul.f32 %v1439, %v1391
          %v1460 = vmul.f32 %v1440, %v1396
          %v1461 = vmul.f32 %v1441, %v1399
          %v1462 = vmul.f32 %v1442, %v1324
          %v1463 = vmul.f32 %v1443, %v1327
          %v1464 = vmul.f32 %v1444, %v1332
          %v1465 = vmul.f32 %v1445, %v1335
          %v1466 = vmul.f32 %v1446, %v1340
          %v1467 = vmul.f32 %v1447, %v1343
          %v1468 = vmul.f32 %v1448, %v1348
          %v1469 = vmul.f32 %v1449, %v1351
          %v1470 = vmul.f32 %v1450, %v1356
          %v1471 = vmul.f32 %v1451, %v1359
          %v1472 = vmul.f32 %v1452, %v1364
          %v1473 = vmul.f32 %v1453, %v1367
          %v1474 = vmul.f32 %v1454, %v1372
          %v1475 = vmul.f32 %v1455, %v1375
          %v1476 = vmul.f32 %v1456, %v1380
          %v1477 = vmul.f32 %v1457, %v1383
          %v1478 = vmul.f32 %v1458, %v1388
          %v1479 = vmul.f32 %v1459, %v1391
          %v1480 = vmul.f32 %v1460, %v1396
          %v1481 = vmul.f32 %v1461, %v1399
          %v1482 = vadd.f32 %v1324, %v1462
          %v1483 = vadd.f32 %v1327, %v1463
          %v1484 = vadd.f32 %v1332, %v1464
          %v1485 = vadd.f32 %v1335, %v1465
          %v1486 = vadd.f32 %v1340, %v1466
          %v1487 = vadd.f32 %v1343, %v1467
          %v1488 = vadd.f32 %v1348, %v1468
          %v1489 = vadd.f32 %v1351, %v1469
          %v1490 = vadd.f32 %v1356, %v1470
          %v1491 = vadd.f32 %v1359, %v1471
          %v1492 = vadd.f32 %v1364, %v1472
          %v1493 = vadd.f32 %v1367, %v1473
          %v1494 = vadd.f32 %v1372, %v1474
          %v1495 = vadd.f32 %v1375, %v1475
          %v1496 = vadd.f32 %v1380, %v1476
          %v1497 = vadd.f32 %v1383, %v1477
          %v1498 = vadd.f32 %v1388, %v1478
          %v1499 = vadd.f32 %v1391, %v1479
          %v1500 = vadd.f32 %v1396, %v1480
          %v1501 = vadd.f32 %v1399, %v1481
          %v1502 = vmul.f32 %v1482, 0.7978846
          %v1503 = vmul.f32 %v1483, 0.7978846
          %v1504 = vmul.f32 %v1484, 0.7978846
          %v1505 = vmul.f32 %v1485, 0.7978846
          %v1506 = vmul.f32 %v1486, 0.7978846
          %v1507 = vmul.f32 %v1487, 0.7978846
          %v1508 = vmul.f32 %v1488, 0.7978846
          %v1509 = vmul.f32 %v1489, 0.7978846
          %v1510 = vmul.f32 %v1490, 0.7978846
          %v1511 = vmul.f32 %v1491, 0.7978846
          %v1512 = vmul.f32 %v1492, 0.7978846
          %v1513 = vmul.f32 %v1493, 0.7978846
          %v1514 = vmul.f32 %v1494, 0.7978846
          %v1515 = vmul.f32 %v1495, 0.7978846
          %v1516 = vmul.f32 %v1496, 0.7978846
          %v1517 = vmul.f32 %v1497, 0.7978846
          %v1518 = vmul.f32 %v1498, 0.7978846
          %v1519 = vmul.f32 %v1499, 0.7978846
          %v1520 = vmul.f32 %v1500, 0.7978846
          %v1521 = vmul.f32 %v1501, 0.7978846
          %v1522 = vtanh.pop %v1502
          %v1523 = vtanh.pop %v1503
          %v1524 = vtanh.pop %v1504
          %v1525 = vtanh.pop %v1505
          %v1526 = vtanh.pop %v1506
          %v1527 = vtanh.pop %v1507
          %v1528 = vtanh.pop %v1508
          %v1529 = vtanh.pop %v1509
          %v1530 = vtanh.pop %v1510
          %v1531 = vtanh.pop %v1511
          %v1532 = vtanh.pop %v1512
          %v1533 = vtanh.pop %v1513
          %v1534 = vtanh.pop %v1514
          %v1535 = vtanh.pop %v1515
          %v1536 = vtanh.pop %v1516
          %v1537 = vtanh.pop %v1517
          %v1538 = vtanh.pop %v1518
          %v1539 = vtanh.pop %v1519
          %v1540 = vtanh.pop %v1520
          %v1541 = vtanh.pop %v1521
          %v1542 = vadd.f32 %v1522, 1.0
          %v1543 = vadd.f32 %v1523, 1.0
          %v1544 = vadd.f32 %v1524, 1.0
          %v1545 = vadd.f32 %v1525, 1.0
          %v1546 = vadd.f32 %v1526, 1.0
          %v1547 = vadd.f32 %v1527, 1.0
          %v1548 = vadd.f32 %v1528, 1.0
          %v1549 = vadd.f32 %v1529, 1.0
          %v1550 = vadd.f32 %v1530, 1.0
          %v1551 = vadd.f32 %v1531, 1.0
          %v1552 = vadd.f32 %v1532, 1.0
          %v1553 = vadd.f32 %v1533, 1.0
          %v1554 = vadd.f32 %v1534, 1.0
          %v1555 = vadd.f32 %v1535, 1.0
          %v1556 = vadd.f32 %v1536, 1.0
          %v1557 = vadd.f32 %v1537, 1.0
          %v1558 = vadd.f32 %v1538, 1.0
          %v1559 = vadd.f32 %v1539, 1.0
          %v1560 = vadd.f32 %v1540, 1.0
          %v1561 = vadd.f32 %v1541, 1.0
          %v1562 = vmul.f32 %v1402, %v1542
          %v1563 = vmul.f32 %v1403, %v1543
          %v1564 = vmul.f32 %v1404, %v1544
          %v1565 = vmul.f32 %v1405, %v1545
          %v1566 = vmul.f32 %v1406, %v1546
          %v1567 = vmul.f32 %v1407, %v1547
          %v1568 = vmul.f32 %v1408, %v1548
          %v1569 = vmul.f32 %v1409, %v1549
          %v1570 = vmul.f32 %v1410, %v1550
          %v1571 = vmul.f32 %v1411, %v1551
          %v1572 = vmul.f32 %v1412, %v1552
          %v1573 = vmul.f32 %v1413, %v1553
          %v1574 = vmul.f32 %v1414, %v1554
          %v1575 = vmul.f32 %v1415, %v1555
          %v1576 = vmul.f32 %v1416, %v1556
          %v1577 = vmul.f32 %v1417, %v1557
          %v1578 = vmul.f32 %v1418, %v1558
          %v1579 = vmul.f32 %v1419, %v1559
          %v1580 = vmul.f32 %v1420, %v1560
          %v1581 = vmul.f32 %v1421, %v1561
          %v1582 = vlaneseq
          %v1583 = vshrl.u32 %v1582, 7
          %v1584 = vadd.s32 %v920, 128
          %v1585 = vmul.u32 %v1583, 77
          %vm1586 = vcmp.ge.s32.totalorder %v920, %v1585
          %vm1587 = vcmp.ge.s32.totalorder %v1584, %v1585
          %v1588 = vadd.s32 %v1585, 77
          %vm1589 = vcmp.lt.s32.totalorder %v920, %v1588
          %vm1590 = vcmp.lt.s32.totalorder %v1584, %v1588
          %vm1591 = vmand %vm1586, %vm1589
          %vm1592 = vmand %vm1587, %vm1590
          %v1593 = vsel %vm1591, 0.012987013, 0.0
          %v1594 = vsel %vm1592, 0.012987013, 0.0
          %vm1595 = vcmask 211968
          %v1597 = vsel %vm1595, %v1594, 0
          %vm1599 = vcmask 1041408
          %v1601 = vsel %vm1599, %v1581, 0
          %1603 = vmatprep.subr.mxu0 0.0
          %1604 = vmatpush1.msra.mxu0 %v1562
          %1605 = vmatprep.subr.mxu0 0.0
          %1606 = vmatpush1.msra.mxu0 %v1563
          %1607 = vmatprep.subr.mxu0 0.0
          %1608 = vmatpush1.msra.mxu0 %v1564
          %1609 = vmatprep.subr.mxu0 0.0
          %1610 = vmatpush1.msra.mxu0 %v1565
          %1611 = vmatprep.subr.mxu0 0.0
          %1612 = vmatpush1.msra.mxu0 %v1566
          %1613 = vmatprep.subr.mxu0 0.0
          %1614 = vmatpush1.msra.mxu0 %v1567
          %1615 = vmatprep.subr.mxu0 0.0
          %1616 = vmatpush1.msra.mxu0 %v1568
          %1617 = vmatprep.subr.mxu0 0.0
          %1618 = vmatpush1.msra.mxu0 %v1569
          %1619 = vmatprep.subr.mxu0 0.0
          %1620 = vmatpush1.msra.mxu0 %v1570
          %1621 = vmatprep.subr.mxu0 0.0
          %1622 = vmatpush1.msra.mxu0 %v1571
          %1623 = vmatprep.subr.mxu0 0.0
          %1624 = vmatpush1.msra.mxu0 %v1572
          %1625 = vmatprep.subr.mxu0 0.0
          %1626 = vmatpush1.msra.mxu0 %v1573
          %1627 = vmatprep.subr.mxu0 0.0
          %1628 = vmatpush1.msra.mxu0 %v1574
          %1629 = vmatprep.subr.mxu0 0.0
          %1630 = vmatpush1.msra.mxu0 %v1575
          %1631 = vmatprep.subr.mxu0 0.0
          %1632 = vmatpush1.msra.mxu0 %v1576
          %1633 = vmatprep.subr.mxu0 0.0
          %1634 = vmatpush1.msra.mxu0 %v1577
          %1635 = vmatprep.subr.mxu0 0.0
          %1636 = vmatpush1.msra.mxu0 %v1578
          %1637 = vmatprep.subr.mxu0 0.0
          %1638 = vmatpush1.msra.mxu0 %v1579
          %1639 = vmatprep.subr.mxu0 0.0
          %1640 = vmatpush1.msra.mxu0 %v1580
          %1641 = vmatprep.subr.mxu0 0.0
          %1642 = vmatpush1.msra.mxu0 %v1601
          %1643 = vmatprep.subr.mxu0 0.0
          %1644 = vmatpush1.msra.mxu0 0.0
          %1645 = vmatprep.subr.mxu0 0.0
          %1646 = vmatpush1.msra.mxu0 0.0
          %1647 = vmatprep.subr.mxu0 0.0
          %1648 = vmatpush1.msra.mxu0 0.0
          %1649 = vmatprep.subr.mxu0 0.0
          %1650 = vmatpush1.msra.mxu0 0.0
          %1651 = vmatprep.subr.mxu0 0.0
          %1652 = vmatpush1.msra.mxu0 0.0
          %1653 = vmatprep.subr.mxu0 0.0
          %1654 = vmatpush1.msra.mxu0 0.0
          %1655 = vmatprep.subr.mxu0 0.0
          %1656 = vmatpush1.msra.mxu0 0.0
          %1657 = vmatprep.subr.mxu0 0.0
          %1658 = vmatpush1.msra.mxu0 0.0
          %1659 = vmatprep.subr.mxu0 0.0
          %1660 = vmatpush1.msra.mxu0 0.0
          %1661 = vmatprep.subr.mxu0 0.0
          %1662 = vmatpush1.msra.mxu0 0.0
          %1663 = vmatprep.subr.mxu0 0.0
          %1664 = vmatpush1.msra.mxu0 0.0
          %1665 = vmatprep.subr.mxu0 0.0
          %1666 = vmatpush1.msra.mxu0 0.0
          %1667 = vmatprep.mubr.f32.mxu0 %v1597
          %1668 = vmatmul.mubr.f32.gmra.mrb[0].mxu0 %v1593
          %v1669 = vpop.f32.mrb[0].mxu0
          %v1670 = vadd.f32 0.0, %v1669
          %v1671 = vpop.f32.mrb[0].mxu0
          %1672 = vdwg.mxu0
          %v1673 = vpack.c.bf16 %v1670, %v1670
          %v1674 = vld [vmem:[%s9] sm:$0xf]
          %v1675 = vld [vmem:[%s9 + $0x4] sm:$0xf]
          %v1676 = vld [vmem:[%s9 + $0x8] sm:$0xf]
          %v1677 = vld [vmem:[%s9 + $0xc] sm:$0xf]
          %v1678 = vld [vmem:[%s9 + $0x10] sm:$0xf]
          %v1679 = vld [vmem:[%s9 + $0x14] sm:$0xf]
          %v1680 = vld [vmem:[%s9 + $0x18] sm:$0xf]
          %v1681 = vld [vmem:[%s9 + $0x1c] sm:$0xf]
          %v1682 = vld [vmem:[%s9 + $0x20] sm:$0xf]
          %v1683 = vld [vmem:[%s9 + $0x24] sm:$0xf]
          %v1684 = vld [vmem:[%s9 + $0x28] sm:$0xf]
          %v1685 = vld [vmem:[%s9 + $0x2c] sm:$0xf]
          %v1686 = vld [vmem:[%s9 + $0x30] sm:$0xf]
          %v1687 = vld [vmem:[%s9 + $0x34] sm:$0xf]
          %v1688 = vld [vmem:[%s9 + $0x38] sm:$0xf]
          %v1689 = vld [vmem:[%s9 + $0x3c] sm:$0xf]
          %v1690 = vld [vmem:[%s10] sm:$0x1]
          %v1692 = vlaneseq
          %v1693 = vshrl.u32 %v1692, 7
          %v1694 = vsub.s32 0, %v1693
          %v1695 = vrot.slane %v1690, %v1694
          %v1713 = vunpack.c.l.b16 %v1674
          %v1714 = vunpack.c.l.b16 %v1675
          %v1715 = vunpack.c.l.b16 %v1676
          %v1716 = vunpack.c.l.b16 %v1677
          %v1717 = vunpack.c.l.b16 %v1678
          %v1718 = vunpack.c.l.b16 %v1679
          %v1719 = vunpack.c.l.b16 %v1680
          %v1720 = vunpack.c.l.b16 %v1681
          %v1721 = vunpack.c.l.b16 %v1682
          %v1722 = vunpack.c.l.b16 %v1683
          %v1723 = vunpack.c.l.b16 %v1684
          %v1724 = vunpack.c.l.b16 %v1685
          %v1725 = vunpack.c.l.b16 %v1686
          %v1726 = vunpack.c.l.b16 %v1687
          %v1727 = vunpack.c.l.b16 %v1688
          %v1728 = vunpack.c.l.b16 %v1689
          %v1729 = vpack.c.b16 %v1714, %v1713
          %v1730 = vpack.c.b16 %v1716, %v1715
          %v1731 = vpack.c.b16 %v1718, %v1717
          %v1732 = vpack.c.b16 %v1720, %v1719
          %v1733 = vpack.c.b16 %v1722, %v1721
          %v1734 = vpack.c.b16 %v1724, %v1723
          %v1735 = vpack.c.b16 %v1726, %v1725
          %v1736 = vpack.c.b16 %v1728, %v1727
          %1745 = vmatprep.subr.bf16.mxu0 0
          %1746 = vmatpush1.bf16.msra.mxu0 %v1729
          %1747 = vmatprep.subr.bf16.mxu0 0
          %1748 = vmatpush1.bf16.msra.mxu0 %v1730
          %1749 = vmatprep.subr.bf16.mxu0 0
          %1750 = vmatpush1.bf16.msra.mxu0 %v1731
          %1751 = vmatprep.subr.bf16.mxu0 0
          %1752 = vmatpush1.bf16.msra.mxu0 %v1732
          %1753 = vmatprep.subr.bf16.mxu0 0
          %1754 = vmatpush1.bf16.msra.mxu0 %v1733
          %1755 = vmatprep.subr.bf16.mxu0 0
          %1756 = vmatpush1.bf16.msra.mxu0 %v1734
          %1757 = vmatprep.subr.bf16.mxu0 0
          %1758 = vmatpush1.bf16.msra.mxu0 %v1735
          %1759 = vmatprep.subr.bf16.mxu0 0
          %1760 = vmatpush1.bf16.msra.mxu0 %v1736
          %1761 = vmatprep.subr.bf16.mxu0 0
          %1762 = vmatpush1.bf16.msra.mxu0 0
          %1763 = vmatprep.subr.bf16.mxu0 0
          %1764 = vmatpush1.bf16.msra.mxu0 0
          %1765 = vmatprep.subr.bf16.mxu0 0
          %1766 = vmatpush1.bf16.msra.mxu0 0
          %1767 = vmatprep.subr.bf16.mxu0 0
          %1768 = vmatpush1.bf16.msra.mxu0 0
          %1769 = vmatprep.subr.bf16.mxu0 0
          %1770 = vmatpush1.bf16.msra.mxu0 0
          %1771 = vmatprep.subr.bf16.mxu0 0
          %1772 = vmatpush1.bf16.msra.mxu0 0
          %1773 = vmatprep.subr.bf16.mxu0 0
          %1774 = vmatpush1.bf16.msra.mxu0 0
          %1775 = vmatprep.subr.bf16.mxu0 0
          %1776 = vmatpush1.bf16.msra.mxu0 0
          %1777 = vmatprep.mubr.bf16.mxu0 0
          %1778 = vmatmul.mubr.bf16.gmra.mrb[0].mxu0 %v1673
          %v1779 = vpop.f32.mrb[0].mxu0
          %v1780 = vadd.f32 %v1695, %v1779
          %v1781 = vpop.f32.mrb[0].mxu0
          %v1782 = vpop.f32.mrb[0].mxu0
          %v1783 = vpop.f32.mrb[0].mxu0
          %1784 = vdwg.mxu0
          %v1785 = vtanh.pop %v1780
          %v1786 = vpack.c.bf16 %v1785, %v1785
          %v1787 = vld [vmem:[#allocation14] sm:$0xf]
          %v1788 = vld [vmem:[#allocation14 + $0x4] sm:$0xf]
          %v1789 = vld [vmem:[#allocation14 + $0x8] sm:$0xf]
          %v1790 = vld [vmem:[#allocation14 + $0xc] sm:$0xf]
          %v1791 = vld [vmem:[#allocation14 + $0x10] sm:$0xf]
          %v1792 = vld [vmem:[#allocation14 + $0x14] sm:$0xf]
          %v1793 = vld [vmem:[#allocation14 + $0x18] sm:$0xf]
          %v1794 = vld [vmem:[#allocation14 + $0x1c] sm:$0xf]
          %v1795 = vld [vmem:[#allocation14 + $0x20] sm:$0xf]
          %v1796 = vld [vmem:[#allocation14 + $0x24] sm:$0xf]
          %v1797 = vld [vmem:[#allocation14 + $0x28] sm:$0xf]
          %v1798 = vld [vmem:[#allocation14 + $0x2c] sm:$0xf]
          %v1799 = vld [vmem:[#allocation14 + $0x30] sm:$0xf]
          %v1800 = vld [vmem:[#allocation14 + $0x34] sm:$0xf]
          %v1801 = vld [vmem:[#allocation14 + $0x38] sm:$0xf]
          %v1802 = vld [vmem:[#allocation14 + $0x3c] sm:$0xf]
          %v1819 = vunpack.c.l.b16 %v1787
          %v1820 = vunpack.c.l.b16 %v1788
          %v1821 = vunpack.c.l.b16 %v1789
          %v1822 = vunpack.c.l.b16 %v1790
          %v1823 = vunpack.c.l.b16 %v1791
          %v1824 = vunpack.c.l.b16 %v1792
          %v1825 = vunpack.c.l.b16 %v1793
          %v1826 = vunpack.c.l.b16 %v1794
          %v1827 = vunpack.c.l.b16 %v1795
          %v1828 = vunpack.c.l.b16 %v1796
          %v1829 = vunpack.c.l.b16 %v1797
          %v1830 = vunpack.c.l.b16 %v1798
          %v1831 = vunpack.c.l.b16 %v1799
          %v1832 = vunpack.c.l.b16 %v1800
          %v1833 = vunpack.c.l.b16 %v1801
          %v1834 = vunpack.c.l.b16 %v1802
          %v1835 = vpack.c.b16 %v1820, %v1819
          %v1836 = vpack.c.b16 %v1822, %v1821
          %v1837 = vpack.c.b16 %v1824, %v1823
          %v1838 = vpack.c.b16 %v1826, %v1825
          %v1839 = vpack.c.b16 %v1828, %v1827
          %v1840 = vpack.c.b16 %v1830, %v1829
          %v1841 = vpack.c.b16 %v1832, %v1831
          %v1842 = vpack.c.b16 %v1834, %v1833
          %1851 = vmatprep.subr.bf16.mxu0 0
          %1852 = vmatpush1.bf16.msra.mxu0 %v1835
          %1853 = vmatprep.subr.bf16.mxu0 0
          %1854 = vmatpush1.bf16.msra.mxu0 %v1836
          %1855 = vmatprep.subr.bf16.mxu0 0
          %1856 = vmatpush1.bf16.msra.mxu0 %v1837
          %1857 = vmatprep.subr.bf16.mxu0 0
          %1858 = vmatpush1.bf16.msra.mxu0 %v1838
          %1859 = vmatprep.subr.bf16.mxu0 0
          %1860 = vmatpush1.bf16.msra.mxu0 %v1839
          %1861 = vmatprep.subr.bf16.mxu0 0
          %1862 = vmatpush1.bf16.msra.mxu0 %v1840
          %1863 = vmatprep.subr.bf16.mxu0 0
          %1864 = vmatpush1.bf16.msra.mxu0 %v1841
          %1865 = vmatprep.subr.bf16.mxu0 0
          %1866 = vmatpush1.bf16.msra.mxu0 %v1842
          %1867 = vmatprep.subr.bf16.mxu0 0
          %1868 = vmatpush1.bf16.msra.mxu0 0
          %1869 = vmatprep.subr.bf16.mxu0 0
          %1870 = vmatpush1.bf16.msra.mxu0 0
          %1871 = vmatprep.subr.bf16.mxu0 0
          %1872 = vmatpush1.bf16.msra.mxu0 0
          %1873 = vmatprep.subr.bf16.mxu0 0
          %1874 = vmatpush1.bf16.msra.mxu0 0
          %1875 = vmatprep.subr.bf16.mxu0 0
          %1876 = vmatpush1.bf16.msra.mxu0 0
          %1877 = vmatprep.subr.bf16.mxu0 0
          %1878 = vmatpush1.bf16.msra.mxu0 0
          %1879 = vmatprep.subr.bf16.mxu0 0
          %1880 = vmatpush1.bf16.msra.mxu0 0
          %1881 = vmatprep.subr.bf16.mxu0 0
          %1882 = vmatpush1.bf16.msra.mxu0 0
          %1883 = vmatprep.mubr.bf16.mxu0 0
          %1884 = vmatmul.mubr.bf16.gmra.mrb[0].mxu0 %v1786
          %v1885 = vpop.f32.mrb[0].mxu0
          %v1886 = vadd.f32 0.0, %v1885
          %v1887 = vpop.f32.mrb[0].mxu0
          %v1888 = vpop.f32.mrb[0].mxu0
          %v1889 = vpop.f32.mrb[0].mxu0
          %1890 = vdwg.mxu0
          %1891 = vst [vmem:[%s500] sm:$0xff] %v1886
        $region108: #{tpu_custom_call.1} parent=67 // pred_fallthru
          _
        %s1892 = sand.u32 %s291, 1
        %s1893 = scalar_lea.sflag [#allocation4], %s1892
        %s1894 = sand.u32 %s291, 1
        %s1895 = smul.addr %s1894, 8
        %s1896 = scalar_lea.vmem [#allocation16], %s1895
        // Predicated region
        $region109: #{tpu_custom_call.1} parent=67 // pred_check
          %p1897 = pneg %p301
        $region110: #{tpu_custom_call.1} parent=67 // pred_check_branch
          %1899 = sbr.rel (%p1897) target = $region112
        $region111: #{tpu_custom_call.1} parent=67 // pred_region
          %s1901 = ssub.s32 128, 128
          %1902 = vsyncadd %s1893, %s1901
          %s1903 = smul.addr %s31, 128
          %s1904 = scalar_lea.hbm %s12, %s1903
          %s1906 = sshll.u32 %s1896, 4
          %s1907 = int_to_ptr.vmem [resolvable:$true] %s1906
          %1909 = dma.vmem_to_hbm [thread:$0]  %s1907, 128, %s1904, %s1893
        $region112: #{tpu_custom_call.1} parent=67 // pred_fallthru
          _
      $region68: #{tpu_custom_call.1} parent=5 // pred_fallthru
        _
      %p1910 = scmp.le.s32.totalorder 2, %s26
      // Predicated region
      $region113: #{tpu_custom_call.1} parent=5 // pred_check
        %p1911 = pneg %p1910
      $region114: #{tpu_custom_call.1} parent=5 // pred_check_branch
        %1913 = sbr.rel (%p1911) target = $region116
      $region115: #{tpu_custom_call.1} parent=5 // pred_region
        %s1914 = ssub.s32 %s26, 2
        // Predicated region
        $region117: #{tpu_custom_call.1} parent=115 // pred_check
          %p1915 = pneg %p307
        $region118: #{tpu_custom_call.1} parent=115 // pred_check_branch
          %1917 = sbr.rel (%p1915) target = $region120
        $region119: #{tpu_custom_call.1} parent=115 // pred_region
          %s1918 = sand.u32 %s292, 1
          %s1919 = scalar_lea.sflag [#allocation4], %s1918
          %s1920 = sand.u32 %s292, 1
          %s1921 = smul.addr %s1920, 8
          %s1922 = scalar_lea.vmem [#allocation16], %s1921
          %1923 = dma.done %s1919, 128
        $region120: #{tpu_custom_call.1} parent=115 // pred_fallthru
          _
      $region116: #{tpu_custom_call.1} parent=5 // pred_fallthru
        _
    $region6: #{tpu_custom_call.1} parent=1 // loop_footer
      %s30 = sadd.s32 1, %s26
    $region7: #{tpu_custom_call.1} parent=1 // loop_footer_branch
      %25 = sbr.rel target = $region3
    $region8: #{tpu_custom_call.1} parent=1 // loop_exit
      _
    %1924 = vsyncpa [#allocation3], 1
    %s1925 = scalar_lea.sflag [#allocation3], 1
    %1926 = vsyncpa %s1925, 1
    %1927 = vsyncpa [#allocation6], 1
    %1928 = vsyncpa [#allocation9], 1
    %1929 = vsyncpa [#allocation12], 1
    %1930 = vsyncpa [#allocation15], 1
    %1931 = vsyncpa [#allocation4], 1
    %s1932 = scalar_lea.sflag [#allocation4], 1
    %1933 = vsyncpa %s1932, 1

</llo_original>
